<compile_context>
chip_gen: v7x
topology: tpu7x:2x2x1
jax: 0.10.0
libtpu: 0.0.40
codegen_flags: <defaults>
</compile_context>

<pallas_src>
import functools
import math

import numpy as np
import jax
import jax.numpy as jnp
from jax.experimental import pallas as pl
from jax.experimental.pallas import tpu as pltpu


def _round_up(n, m):
    return ((n + m - 1) // m) * m


def _split_bf16(a):
    """Split an f32 array into (hi, lo) bf16 parts with a ~= hi + lo."""
    hi = a.astype(jnp.bfloat16)
    lo = (a - hi.astype(jnp.float32)).astype(jnp.bfloat16)
    return hi, lo


def _dot_f32_3x(a, b):
    """~f32-accurate matmul via 3 native bf16 MXU passes (bf16_3x / 'HIGH')."""
    a_hi, a_lo = _split_bf16(a)
    b_hi, b_lo = _split_bf16(b)
    acc = jnp.dot(a_hi, b_hi, preferred_element_type=jnp.float32)
    acc = acc + jnp.dot(a_lo, b_hi, preferred_element_type=jnp.float32)
    acc = acc + jnp.dot(a_hi, b_lo, preferred_element_type=jnp.float32)
    return acc


def _make_kernel(T, B, C, HW, N, TC, Cout, G1, G2, K1, K2, KMAX, shifts, tau):
    inv_tau = 1.0 / tau

    def kernel(x_ref, w1_ref, b1_ref, w2_ref, b2_ref, gum_ref, mask_ref,
               out_ref, im_ref):
        # x is the original input flattened to (T*B*C, H*W); the conv input
        # y = input.view(B, T*C, H, W) is only a row regrouping of the same
        # buffer, so x is DMA'd once and both views are derived in-kernel.
        xv = x_ref[...]                                               # (R, HW) f32

        # Conv operand with the B batches stacked along the lane axis ->
        # the matmul N dimension becomes B*HW and one dot serves all batches.
        y = jnp.concatenate([xv[b * TC:(b + 1) * TC, :] for b in range(B)],
                            axis=1)                                   # (TC, N)

        # Zero the im2col scratch once so the (G1 - TC) pad rows of each tap
        # group are exactly 0 (their weight columns are 0 too, but stale VMEM
        # could hold NaNs and 0 * NaN != 0).
        im_ref[...] = jnp.zeros((KMAX, N), jnp.float32)

        # ---- conv1: 3x3, pad 1 -> one K = 9*G1 MXU contraction ----------------
        # Each tap window is a lane roll of the *unpadded* plane; the mask row
        # zeros exactly the positions whose source pixel falls outside the HxW
        # plane (this also kills cross-batch / wrap-around lanes).
        for k in range(9):
            sh = shifts[k]
            win = y if sh == 0 else pltpu.roll(y, sh, axis=1)
            win = win * mask_ref[k:k + 1, :]
            im_ref[k * G1:k * G1 + TC, :] = win
        a1 = _dot_f32_3x(w1_ref[...], im_ref[0:K1, :])                # (CO1P, N)
        h1 = jnp.maximum(a1 + b1_ref[...], 0.0)                       # pad rows stay 0

        # ---- conv2: 3x3, pad 1 -> one K = 9*G2 MXU contraction ----------------
        for k in range(9):
            sh = shifts[k]
            win = h1 if sh == 0 else pltpu.roll(h1, sh, axis=1)
            win = win * mask_ref[k:k + 1, :]
            im_ref[k * G2:(k + 1) * G2, :] = win
        a2 = _dot_f32_3x(w2_ref[...], im_ref[0:K2, :])                # (CO2P, N)
        h2 = jnp.maximum(a2 + b2_ref[...], 0.0)[:Cout, :]             # (Cout, N)

        # ---- gumbel-softmax over the channel (sublane) axis -------------------
        gum = jnp.concatenate([gum_ref[b] for b in range(B)], axis=1) # (Cout, N)
        logits = (h2 + gum) * inv_tau
        m = jnp.max(logits, axis=0, keepdims=True)
        e = jnp.exp(logits - m)
        den = jnp.sum(e, axis=0, keepdims=True)
        r = pl.reciprocal(den, approx=True)                           # EUP slot
        r = r * (2.0 - den * r)                                       # one Newton step
        gate = e * r                                                  # (Cout, N)

        # ---- gating epilogue: out[t,b,c,:] = x[t,b,c,:] * (1 + gate[b,t,:]) ---
        for t in range(T):
            for b in range(B):
                g = gate[t:t + 1, b * HW:(b + 1) * HW]                # (1, HW)
                r0 = (t * B + b) * C
                out_ref[r0:r0 + C, :] = (
                    xv[r0:r0 + C, :] * (1.0 + g)).astype(out_ref.dtype)

    return kernel


@functools.partial(jax.jit, static_argnames=("tau",))
def longshort_gate(x, w1, b1, w2, b2, gumbel, tau=0.3):
    T, B, C, H, W = x.shape
    TC, HW = T * C, H * W
    N = B * HW
    R = T * B * C
    Cmid, Cin = int(w1.shape[0]), int(w1.shape[1])
    Cout = int(w2.shape[0])
    assert Cin == TC, "conv1 in_channels must equal T*C (torch .view requirement)"
    assert int(w2.shape[1]) == Cmid
    assert Cout >= T, "output_dim must be >= T (gate[:, t] indexes channels)"

    f32 = jnp.float32
    CO1P = _round_up(Cmid, 8)          # padded conv1 output rows
    CO2P = _round_up(Cout, 8)          # padded conv2 output rows
    G1 = _round_up(TC, 8)              # per-tap contraction group, conv1
    G2 = CO1P                          # per-tap contraction group, conv2 (= h1 rows)
    K1, K2 = 9 * G1, 9 * G2
    KMAX = max(K1, K2)

    # Single feed of x, lane-dense unpadded layout (HW = 256 = 2x128 lanes).
    x2d = x.astype(f32).reshape(R, HW)
    gum3 = gumbel.astype(f32).reshape(B, Cout, HW)

    # Per-tap weights stacked along the contraction dim (im2col order):
    # w_stack[co, k*G + ci] = w[co, ci, k//3, k%3].
    w1s = jnp.transpose(w1.astype(f32), (0, 2, 3, 1)).reshape(Cmid, 9, TC)
    w1s = jnp.pad(w1s, ((0, CO1P - Cmid), (0, 0), (0, G1 - TC))).reshape(CO1P, K1)
    w2s = jnp.transpose(w2.astype(f32), (0, 2, 3, 1)).reshape(Cout, 9, Cmid)
    w2s = jnp.pad(w2s, ((0, CO2P - Cout), (0, 0), (0, G2 - Cmid))).reshape(CO2P, K2)
    b1c = jnp.pad(b1.astype(f32), (0, CO1P - Cmid)).reshape(CO1P, 1)
    b2c = jnp.pad(b2.astype(f32), (0, CO2P - Cout)).reshape(CO2P, 1)

    # Static tap shifts (lane roll amounts) and validity masks: tap k=(dy,dx)
    # reads source pixel (h+dy-1, w+dx-1); mask is 1 where that pixel lies
    # inside the HxW plane.  Masks are tiled over the B lane-stacked planes.
    hh = np.repeat(np.arange(H), W)
    ww = np.tile(np.arange(W), H)
    shifts, mask_rows = [], []
    for k in range(9):
        dy, dx = k // 3, k % 3
        d = (dy - 1) * W + (dx - 1)
        shifts.append((-d) % N)
        valid = ((hh + dy - 1 >= 0) & (hh + dy - 1 <= H - 1) &
                 (ww + dx - 1 >= 0) & (ww + dx - 1 <= W - 1))
        mask_rows.append(np.tile(valid.astype(np.float32), B))
    masks = jnp.asarray(np.stack(mask_rows, axis=0))                   # (9, N)

    kernel = _make_kernel(T, B, C, HW, N, TC, Cout,
                          G1, G2, K1, K2, KMAX, tuple(shifts), tau)

    out2d = pl.pallas_call(
        kernel,
        out_shape=jax.ShapeDtypeStruct((R, HW), f32),
        grid=(1,),
        in_specs=[
            pl.BlockSpec((R, HW), lambda i: (0, 0)),            # x (fed once)
            pl.BlockSpec((CO1P, K1), lambda i: (0, 0)),         # conv1 weights
            pl.BlockSpec((CO1P, 1), lambda i: (0, 0)),          # conv1 bias
            pl.BlockSpec((CO2P, K2), lambda i: (0, 0)),         # conv2 weights
            pl.BlockSpec((CO2P, 1), lambda i: (0, 0)),          # conv2 bias
            pl.BlockSpec((B, Cout, HW), lambda i: (0, 0, 0)),   # gumbel noise
            pl.BlockSpec((9, N), lambda i: (0, 0)),             # tap masks
        ],
        out_specs=pl.BlockSpec((R, HW), lambda i: (0, 0)),
        scratch_shapes=[pltpu.VMEM((KMAX, N), jnp.float32)],    # im2col staging
        compiler_params=pltpu.CompilerParams(
            dimension_semantics=("arbitrary",)),
    )(x2d, w1s, b1c, w2s, b2c, gum3, masks)

    # Free row-major split back to (T, B, C, H, W).
    return out2d.reshape(T, B, C, H, W).astype(x.dtype)


def longshort_gate_reference(x, w1, b1, w2, b2, gumbel, tau=0.3):
    """Pure-JAX reference with the same (externally supplied) Gumbel noise."""
    T, B, C, H, W = x.shape
    y = x.reshape(B, T * C, H, W)

    def conv(z, w, bias):
        o = jax.lax.conv_general_dilated(
            z, w, window_strides=(1, 1), padding=((1, 1), (1, 1)),
            dimension_numbers=("NCHW", "OIHW", "NCHW"),
            precision=jax.lax.Precision.HIGHEST)
        return jax.nn.relu(o + bias[None, :, None, None])

    g = conv(conv(y, w1, b1), w2, b2)                  # (B, Cout, H, W)
    gate = jax.nn.softmax((g + gumbel) / tau, axis=1)  # softmax over channels
    outs = [x[t] * (1.0 + gate[:, t][:, None, :, :]) for t in range(T)]
    return jnp.stack(outs, axis=0)


if __name__ == "__main__":
    T, B, C, H, W = 2, 2, 2, 16, 16
    input_dim = T * C          # conv1 in_channels must equal T*C for torch's .view
    output_dim = 4             # must be >= T (gate[:, t] indexes output channels)
    Cmid = input_dim // 2

    key = jax.random.PRNGKey(0)
    kx, kw1, kb1, kw2, kb2, kg = jax.random.split(key, 6)
    x = jax.random.normal(kx, (T, B, C, H, W), jnp.float32)

    bound1 = 1.0 / math.sqrt(input_dim * 9)
    w1 = jax.random.uniform(kw1, (Cmid, input_dim, 3, 3), jnp.float32, -bound1, bound1)
    b1 = jax.random.uniform(kb1, (Cmid,), jnp.float32, -bound1, bound1)
    bound2 = 1.0 / math.sqrt(Cmid * 9)
    w2 = jax.random.uniform(kw2, (output_dim, Cmid, 3, 3), jnp.float32, -bound2, bound2)
    b2 = jax.random.uniform(kb2, (output_dim,), jnp.float32, -bound2, bound2)

    # TODO(synk): F.gumbel_softmax samples Gumbel noise internally; here the noise
    # is drawn deterministically in the wrapper and passed to the kernel as input.
    gumbel = jax.random.gumbel(kg, (B, output_dim, H, W), jnp.float32)

    out = jax.block_until_ready(longshort_gate(x, w1, b1, w2, b2, gumbel, tau=0.3))
    ref = longshort_gate_reference(x, w1, b1, w2, b2, gumbel, tau=0.3)

    assert out.shape == (T, B, C, H, W)
    err = float(jnp.max(jnp.abs(out - ref)))
    assert jnp.allclose(out, ref, atol=1e-4, rtol=1e-4), f"max abs err {err}"
    print("KERNEL_OK")
</pallas_src>

<mosaic_0001>
module attributes {stable_mosaic.version = 11 : i64} {
  func.func @kernel(%arg0: i32, %arg1: memref<8x256xf32, #tpu.memory_space<vmem>>, %arg2: memref<8x72xf32, #tpu.memory_space<vmem>>, %arg3: memref<8x1xf32, #tpu.memory_space<vmem>>, %arg4: memref<8x72xf32, #tpu.memory_space<vmem>>, %arg5: memref<8x1xf32, #tpu.memory_space<vmem>>, %arg6: memref<2x4x256xf32, #tpu.memory_space<vmem>>, %arg7: memref<9x512xf32, #tpu.memory_space<vmem>>, %arg8: memref<8x256xf32, #tpu.memory_space<vmem>>, %arg9: memref<72x512xf32, #tpu.memory_space<vmem>>) attributes {dimension_semantics = [#tpu.dimension_semantics<arbitrary>], iteration_bounds = array<i64: 1>, scalar_prefetch = 0 : i64, scratch_operands = 1 : i64, tpu.core_type = #tpu.core_type<tc>, window_params = [{pipeline_mode = #tpu.pipeline_mode<synchronous>, transform_indices = @transform_0, window_bounds = array<i64: 8, 256>}, {pipeline_mode = #tpu.pipeline_mode<synchronous>, transform_indices = @transform_1, window_bounds = array<i64: 8, 72>}, {pipeline_mode = #tpu.pipeline_mode<synchronous>, transform_indices = @transform_2, window_bounds = array<i64: 8, 1>}, {pipeline_mode = #tpu.pipeline_mode<synchronous>, transform_indices = @transform_3, window_bounds = array<i64: 8, 72>}, {pipeline_mode = #tpu.pipeline_mode<synchronous>, transform_indices = @transform_4, window_bounds = array<i64: 8, 1>}, {pipeline_mode = #tpu.pipeline_mode<synchronous>, transform_indices = @transform_5, window_bounds = array<i64: 2, 4, 256>}, {pipeline_mode = #tpu.pipeline_mode<synchronous>, transform_indices = @transform_6, window_bounds = array<i64: 9, 512>}, {pipeline_mode = #tpu.pipeline_mode<synchronous>, transform_indices = @transform_7, window_bounds = array<i64: 8, 256>}]} {
    %c0 = arith.constant 0 : index
    %c0_0 = arith.constant 0 : index
    %0 = vector.load %arg1[%c0, %c0_0] : memref<8x256xf32, #tpu.memory_space<vmem>>, vector<8x256xf32>
    %1 = vector.extract_strided_slice %0 {offsets = [0, 0], sizes = [4, 256], strides = [1, 1]} : vector<8x256xf32> to vector<4x256xf32>
    %2 = vector.extract_strided_slice %0 {offsets = [4, 0], sizes = [4, 256], strides = [1, 1]} : vector<8x256xf32> to vector<4x256xf32>
    %3 = tpu.concatenate %1, %2 in 1 : vector<4x256xf32>, vector<4x256xf32> -> vector<4x512xf32>
    %cst = arith.constant 0.000000e+00 : f32
    %4 = vector.broadcast %cst : f32 to vector<72x512xf32>
    %c0_1 = arith.constant 0 : index
    %c0_2 = arith.constant 0 : index
    %5 = vector.load %arg9[%c0_1, %c0_2] : memref<72x512xf32, #tpu.memory_space<vmem>>, vector<72x512xf32>
    tpu.vector_store %arg9[%c0_1, %c0_2], %4 {strides = array<i32>} : memref<72x512xf32, #tpu.memory_space<vmem>>, vector<72x512xf32>,
    %c17_i32 = arith.constant 17 : i32
    %6 = tpu.dynamic_rotate %3 by %c17_i32 dim 1 : vector<4x512xf32>, i32 -> vector<4x512xf32>
    %c0_3 = arith.constant 0 : index
    %c0_4 = arith.constant 0 : index
    %7 = vector.load %arg7[%c0_3, %c0_4] : memref<9x512xf32, #tpu.memory_space<vmem>>, vector<1x512xf32>
    %8 = vector.broadcast %7 : vector<1x512xf32> to vector<4x512xf32>
    %9 = arith.mulf %6, %8 : vector<4x512xf32>
    %c0_5 = arith.constant 0 : index
    %c0_6 = arith.constant 0 : index
    %10 = vector.load %arg9[%c0_5, %c0_6] : memref<72x512xf32, #tpu.memory_space<vmem>>, vector<4x512xf32>
    tpu.vector_store %arg9[%c0_5, %c0_6], %9 {strides = array<i32>} : memref<72x512xf32, #tpu.memory_space<vmem>>, vector<4x512xf32>,
    %c16_i32 = arith.constant 16 : i32
    %11 = tpu.dynamic_rotate %3 by %c16_i32 dim 1 : vector<4x512xf32>, i32 -> vector<4x512xf32>
    %c1 = arith.constant 1 : index
    %c0_7 = arith.constant 0 : index
    %12 = vector.load %arg7[%c1, %c0_7] : memref<9x512xf32, #tpu.memory_space<vmem>>, vector<1x512xf32>
    %13 = vector.broadcast %12 : vector<1x512xf32> to vector<4x512xf32>
    %14 = arith.mulf %11, %13 : vector<4x512xf32>
    %c8 = arith.constant 8 : index
    %c0_8 = arith.constant 0 : index
    %15 = vector.load %arg9[%c8, %c0_8] : memref<72x512xf32, #tpu.memory_space<vmem>>, vector<4x512xf32>
    tpu.vector_store %arg9[%c8, %c0_8], %14 {strides = array<i32>} : memref<72x512xf32, #tpu.memory_space<vmem>>, vector<4x512xf32>,
    %c15_i32 = arith.constant 15 : i32
    %16 = tpu.dynamic_rotate %3 by %c15_i32 dim 1 : vector<4x512xf32>, i32 -> vector<4x512xf32>
    %c2 = arith.constant 2 : index
    %c0_9 = arith.constant 0 : index
    %17 = vector.load %arg7[%c2, %c0_9] : memref<9x512xf32, #tpu.memory_space<vmem>>, vector<1x512xf32>
    %18 = vector.broadcast %17 : vector<1x512xf32> to vector<4x512xf32>
    %19 = arith.mulf %16, %18 : vector<4x512xf32>
    %c16 = arith.constant 16 : index
    %c0_10 = arith.constant 0 : index
    %20 = vector.load %arg9[%c16, %c0_10] : memref<72x512xf32, #tpu.memory_space<vmem>>, vector<4x512xf32>
    tpu.vector_store %arg9[%c16, %c0_10], %19 {strides = array<i32>} : memref<72x512xf32, #tpu.memory_space<vmem>>, vector<4x512xf32>,
    %c1_i32 = arith.constant 1 : i32
    %21 = tpu.dynamic_rotate %3 by %c1_i32 dim 1 : vector<4x512xf32>, i32 -> vector<4x512xf32>
    %c3 = arith.constant 3 : index
    %c0_11 = arith.constant 0 : index
    %22 = vector.load %arg7[%c3, %c0_11] : memref<9x512xf32, #tpu.memory_space<vmem>>, vector<1x512xf32>
    %23 = vector.broadcast %22 : vector<1x512xf32> to vector<4x512xf32>
    %24 = arith.mulf %21, %23 : vector<4x512xf32>
    %c24 = arith.constant 24 : index
    %c0_12 = arith.constant 0 : index
    %25 = vector.load %arg9[%c24, %c0_12] : memref<72x512xf32, #tpu.memory_space<vmem>>, vector<4x512xf32>
    tpu.vector_store %arg9[%c24, %c0_12], %24 {strides = array<i32>} : memref<72x512xf32, #tpu.memory_space<vmem>>, vector<4x512xf32>,
    %c4 = arith.constant 4 : index
    %c0_13 = arith.constant 0 : index
    %26 = vector.load %arg7[%c4, %c0_13] : memref<9x512xf32, #tpu.memory_space<vmem>>, vector<1x512xf32>
    %27 = vector.broadcast %26 : vector<1x512xf32> to vector<4x512xf32>
    %28 = arith.mulf %3, %27 : vector<4x512xf32>
    %c32 = arith.constant 32 : index
    %c0_14 = arith.constant 0 : index
    %29 = vector.load %arg9[%c32, %c0_14] : memref<72x512xf32, #tpu.memory_space<vmem>>, vector<4x512xf32>
    tpu.vector_store %arg9[%c32, %c0_14], %28 {strides = array<i32>} : memref<72x512xf32, #tpu.memory_space<vmem>>, vector<4x512xf32>,
    %c511_i32 = arith.constant 511 : i32
    %30 = tpu.dynamic_rotate %3 by %c511_i32 dim 1 : vector<4x512xf32>, i32 -> vector<4x512xf32>
    %c5 = arith.constant 5 : index
    %c0_15 = arith.constant 0 : index
    %31 = vector.load %arg7[%c5, %c0_15] : memref<9x512xf32, #tpu.memory_space<vmem>>, vector<1x512xf32>
    %32 = vector.broadcast %31 : vector<1x512xf32> to vector<4x512xf32>
    %33 = arith.mulf %30, %32 : vector<4x512xf32>
    %c40 = arith.constant 40 : index
    %c0_16 = arith.constant 0 : index
    %34 = vector.load %arg9[%c40, %c0_16] : memref<72x512xf32, #tpu.memory_space<vmem>>, vector<4x512xf32>
    tpu.vector_store %arg9[%c40, %c0_16], %33 {strides = array<i32>} : memref<72x512xf32, #tpu.memory_space<vmem>>, vector<4x512xf32>,
    %c497_i32 = arith.constant 497 : i32
    %35 = tpu.dynamic_rotate %3 by %c497_i32 dim 1 : vector<4x512xf32>, i32 -> vector<4x512xf32>
    %c6 = arith.constant 6 : index
    %c0_17 = arith.constant 0 : index
    %36 = vector.load %arg7[%c6, %c0_17] : memref<9x512xf32, #tpu.memory_space<vmem>>, vector<1x512xf32>
    %37 = vector.broadcast %36 : vector<1x512xf32> to vector<4x512xf32>
    %38 = arith.mulf %35, %37 : vector<4x512xf32>
    %c48 = arith.constant 48 : index
    %c0_18 = arith.constant 0 : index
    %39 = vector.load %arg9[%c48, %c0_18] : memref<72x512xf32, #tpu.memory_space<vmem>>, vector<4x512xf32>
    tpu.vector_store %arg9[%c48, %c0_18], %38 {strides = array<i32>} : memref<72x512xf32, #tpu.memory_space<vmem>>, vector<4x512xf32>,
    %c496_i32 = arith.constant 496 : i32
    %40 = tpu.dynamic_rotate %3 by %c496_i32 dim 1 : vector<4x512xf32>, i32 -> vector<4x512xf32>
    %c7 = arith.constant 7 : index
    %c0_19 = arith.constant 0 : index
    %41 = vector.load %arg7[%c7, %c0_19] : memref<9x512xf32, #tpu.memory_space<vmem>>, vector<1x512xf32>
    %42 = vector.broadcast %41 : vector<1x512xf32> to vector<4x512xf32>
    %43 = arith.mulf %40, %42 : vector<4x512xf32>
    %c56 = arith.constant 56 : index
    %c0_20 = arith.constant 0 : index
    %44 = vector.load %arg9[%c56, %c0_20] : memref<72x512xf32, #tpu.memory_space<vmem>>, vector<4x512xf32>
    tpu.vector_store %arg9[%c56, %c0_20], %43 {strides = array<i32>} : memref<72x512xf32, #tpu.memory_space<vmem>>, vector<4x512xf32>,
    %c495_i32 = arith.constant 495 : i32
    %45 = tpu.dynamic_rotate %3 by %c495_i32 dim 1 : vector<4x512xf32>, i32 -> vector<4x512xf32>
    %c8_21 = arith.constant 8 : index
    %c0_22 = arith.constant 0 : index
    %46 = vector.load %arg7[%c8_21, %c0_22] : memref<9x512xf32, #tpu.memory_space<vmem>>, vector<1x512xf32>
    %47 = vector.broadcast %46 : vector<1x512xf32> to vector<4x512xf32>
    %48 = arith.mulf %45, %47 : vector<4x512xf32>
    %c64 = arith.constant 64 : index
    %c0_23 = arith.constant 0 : index
    %49 = vector.load %arg9[%c64, %c0_23] : memref<72x512xf32, #tpu.memory_space<vmem>>, vector<4x512xf32>
    tpu.vector_store %arg9[%c64, %c0_23], %48 {strides = array<i32>} : memref<72x512xf32, #tpu.memory_space<vmem>>, vector<4x512xf32>,
    %c0_24 = arith.constant 0 : index
    %c0_25 = arith.constant 0 : index
    %50 = vector.load %arg2[%c0_24, %c0_25] : memref<8x72xf32, #tpu.memory_space<vmem>>, vector<8x72xf32>
    %c0_26 = arith.constant 0 : index
    %c0_27 = arith.constant 0 : index
    %51 = vector.load %arg9[%c0_26, %c0_27] : memref<72x512xf32, #tpu.memory_space<vmem>>, vector<72x512xf32>
    %52 = arith.truncf %50 : vector<8x72xf32> to vector<8x72xbf16>
    %53 = arith.extf %52 : vector<8x72xbf16> to vector<8x72xf32>
    %54 = arith.subf %50, %53 : vector<8x72xf32>
    %55 = arith.truncf %54 : vector<8x72xf32> to vector<8x72xbf16>
    %56 = arith.truncf %51 : vector<72x512xf32> to vector<72x512xbf16>
    %57 = arith.extf %56 : vector<72x512xbf16> to vector<72x512xf32>
    %58 = arith.subf %51, %57 : vector<72x512xf32>
    %59 = arith.truncf %58 : vector<72x512xf32> to vector<72x512xbf16>
    %cst_28 = arith.constant dense<0.000000e+00> : vector<8x512xf32>
    %60 = tpu.matmul %52, %56, %cst_28 {dimension_numbers = #tpu.dot_dimension_numbers<[1], [0], [0], [1], [0, 0, 1, 1], [], []>} : vector<8x72xbf16>, vector<72x512xbf16>, vector<8x512xf32> -> vector<8x512xf32>
    %cst_29 = arith.constant dense<0.000000e+00> : vector<8x512xf32>
    %61 = tpu.matmul %55, %56, %cst_29 {dimension_numbers = #tpu.dot_dimension_numbers<[1], [0], [0], [1], [0, 0, 1, 1], [], []>} : vector<8x72xbf16>, vector<72x512xbf16>, vector<8x512xf32> -> vector<8x512xf32>
    %62 = arith.addf %60, %61 : vector<8x512xf32>
    %cst_30 = arith.constant dense<0.000000e+00> : vector<8x512xf32>
    %63 = tpu.matmul %52, %59, %cst_30 {dimension_numbers = #tpu.dot_dimension_numbers<[1], [0], [0], [1], [0, 0, 1, 1], [], []>} : vector<8x72xbf16>, vector<72x512xbf16>, vector<8x512xf32> -> vector<8x512xf32>
    %64 = arith.addf %62, %63 : vector<8x512xf32>
    %c0_31 = arith.constant 0 : index
    %c0_32 = arith.constant 0 : index
    %65 = vector.load %arg3[%c0_31, %c0_32] : memref<8x1xf32, #tpu.memory_space<vmem>>, vector<8x1xf32>
    %66 = vector.broadcast %65 : vector<8x1xf32> to vector<8x512xf32>
    %67 = arith.addf %64, %66 : vector<8x512xf32>
    %cst_33 = arith.constant 0.000000e+00 : f32
    %68 = vector.broadcast %cst_33 : f32 to vector<8x512xf32>
    %69 = arith.maximumf %67, %68 : vector<8x512xf32>
    %c17_i32_34 = arith.constant 17 : i32
    %70 = tpu.dynamic_rotate %69 by %c17_i32_34 dim 1 : vector<8x512xf32>, i32 -> vector<8x512xf32>
    %c0_35 = arith.constant 0 : index
    %c0_36 = arith.constant 0 : index
    %71 = vector.load %arg7[%c0_35, %c0_36] : memref<9x512xf32, #tpu.memory_space<vmem>>, vector<1x512xf32>
    %72 = vector.broadcast %71 : vector<1x512xf32> to vector<8x512xf32>
    %73 = arith.mulf %70, %72 : vector<8x512xf32>
    %c0_37 = arith.constant 0 : index
    %c0_38 = arith.constant 0 : index
    %74 = vector.load %arg9[%c0_37, %c0_38] : memref<72x512xf32, #tpu.memory_space<vmem>>, vector<8x512xf32>
    tpu.vector_store %arg9[%c0_37, %c0_38], %73 {strides = array<i32>} : memref<72x512xf32, #tpu.memory_space<vmem>>, vector<8x512xf32>,
    %c16_i32_39 = arith.constant 16 : i32
    %75 = tpu.dynamic_rotate %69 by %c16_i32_39 dim 1 : vector<8x512xf32>, i32 -> vector<8x512xf32>
    %c1_40 = arith.constant 1 : index
    %c0_41 = arith.constant 0 : index
    %76 = vector.load %arg7[%c1_40, %c0_41] : memref<9x512xf32, #tpu.memory_space<vmem>>, vector<1x512xf32>
    %77 = vector.broadcast %76 : vector<1x512xf32> to vector<8x512xf32>
    %78 = arith.mulf %75, %77 : vector<8x512xf32>
    %c8_42 = arith.constant 8 : index
    %c0_43 = arith.constant 0 : index
    %79 = vector.load %arg9[%c8_42, %c0_43] : memref<72x512xf32, #tpu.memory_space<vmem>>, vector<8x512xf32>
    tpu.vector_store %arg9[%c8_42, %c0_43], %78 {strides = array<i32>} : memref<72x512xf32, #tpu.memory_space<vmem>>, vector<8x512xf32>,
    %c15_i32_44 = arith.constant 15 : i32
    %80 = tpu.dynamic_rotate %69 by %c15_i32_44 dim 1 : vector<8x512xf32>, i32 -> vector<8x512xf32>
    %c2_45 = arith.constant 2 : index
    %c0_46 = arith.constant 0 : index
    %81 = vector.load %arg7[%c2_45, %c0_46] : memref<9x512xf32, #tpu.memory_space<vmem>>, vector<1x512xf32>
    %82 = vector.broadcast %81 : vector<1x512xf32> to vector<8x512xf32>
    %83 = arith.mulf %80, %82 : vector<8x512xf32>
    %c16_47 = arith.constant 16 : index
    %c0_48 = arith.constant 0 : index
    %84 = vector.load %arg9[%c16_47, %c0_48] : memref<72x512xf32, #tpu.memory_space<vmem>>, vector<8x512xf32>
    tpu.vector_store %arg9[%c16_47, %c0_48], %83 {strides = array<i32>} : memref<72x512xf32, #tpu.memory_space<vmem>>, vector<8x512xf32>,
    %c1_i32_49 = arith.constant 1 : i32
    %85 = tpu.dynamic_rotate %69 by %c1_i32_49 dim 1 : vector<8x512xf32>, i32 -> vector<8x512xf32>
    %c3_50 = arith.constant 3 : index
    %c0_51 = arith.constant 0 : index
    %86 = vector.load %arg7[%c3_50, %c0_51] : memref<9x512xf32, #tpu.memory_space<vmem>>, vector<1x512xf32>
    %87 = vector.broadcast %86 : vector<1x512xf32> to vector<8x512xf32>
    %88 = arith.mulf %85, %87 : vector<8x512xf32>
    %c24_52 = arith.constant 24 : index
    %c0_53 = arith.constant 0 : index
    %89 = vector.load %arg9[%c24_52, %c0_53] : memref<72x512xf32, #tpu.memory_space<vmem>>, vector<8x512xf32>
    tpu.vector_store %arg9[%c24_52, %c0_53], %88 {strides = array<i32>} : memref<72x512xf32, #tpu.memory_space<vmem>>, vector<8x512xf32>,
    %c4_54 = arith.constant 4 : index
    %c0_55 = arith.constant 0 : index
    %90 = vector.load %arg7[%c4_54, %c0_55] : memref<9x512xf32, #tpu.memory_space<vmem>>, vector<1x512xf32>
    %91 = vector.broadcast %90 : vector<1x512xf32> to vector<8x512xf32>
    %92 = arith.mulf %69, %91 : vector<8x512xf32>
    %c32_56 = arith.constant 32 : index
    %c0_57 = arith.constant 0 : index
    %93 = vector.load %arg9[%c32_56, %c0_57] : memref<72x512xf32, #tpu.memory_space<vmem>>, vector<8x512xf32>
    tpu.vector_store %arg9[%c32_56, %c0_57], %92 {strides = array<i32>} : memref<72x512xf32, #tpu.memory_space<vmem>>, vector<8x512xf32>,
    %c511_i32_58 = arith.constant 511 : i32
    %94 = tpu.dynamic_rotate %69 by %c511_i32_58 dim 1 : vector<8x512xf32>, i32 -> vector<8x512xf32>
    %c5_59 = arith.constant 5 : index
    %c0_60 = arith.constant 0 : index
    %95 = vector.load %arg7[%c5_59, %c0_60] : memref<9x512xf32, #tpu.memory_space<vmem>>, vector<1x512xf32>
    %96 = vector.broadcast %95 : vector<1x512xf32> to vector<8x512xf32>
    %97 = arith.mulf %94, %96 : vector<8x512xf32>
    %c40_61 = arith.constant 40 : index
    %c0_62 = arith.constant 0 : index
    %98 = vector.load %arg9[%c40_61, %c0_62] : memref<72x512xf32, #tpu.memory_space<vmem>>, vector<8x512xf32>
    tpu.vector_store %arg9[%c40_61, %c0_62], %97 {strides = array<i32>} : memref<72x512xf32, #tpu.memory_space<vmem>>, vector<8x512xf32>,
    %c497_i32_63 = arith.constant 497 : i32
    %99 = tpu.dynamic_rotate %69 by %c497_i32_63 dim 1 : vector<8x512xf32>, i32 -> vector<8x512xf32>
    %c6_64 = arith.constant 6 : index
    %c0_65 = arith.constant 0 : index
    %100 = vector.load %arg7[%c6_64, %c0_65] : memref<9x512xf32, #tpu.memory_space<vmem>>, vector<1x512xf32>
    %101 = vector.broadcast %100 : vector<1x512xf32> to vector<8x512xf32>
    %102 = arith.mulf %99, %101 : vector<8x512xf32>
    %c48_66 = arith.constant 48 : index
    %c0_67 = arith.constant 0 : index
    %103 = vector.load %arg9[%c48_66, %c0_67] : memref<72x512xf32, #tpu.memory_space<vmem>>, vector<8x512xf32>
    tpu.vector_store %arg9[%c48_66, %c0_67], %102 {strides = array<i32>} : memref<72x512xf32, #tpu.memory_space<vmem>>, vector<8x512xf32>,
    %c496_i32_68 = arith.constant 496 : i32
    %104 = tpu.dynamic_rotate %69 by %c496_i32_68 dim 1 : vector<8x512xf32>, i32 -> vector<8x512xf32>
    %c7_69 = arith.constant 7 : index
    %c0_70 = arith.constant 0 : index
    %105 = vector.load %arg7[%c7_69, %c0_70] : memref<9x512xf32, #tpu.memory_space<vmem>>, vector<1x512xf32>
    %106 = vector.broadcast %105 : vector<1x512xf32> to vector<8x512xf32>
    %107 = arith.mulf %104, %106 : vector<8x512xf32>
    %c56_71 = arith.constant 56 : index
    %c0_72 = arith.constant 0 : index
    %108 = vector.load %arg9[%c56_71, %c0_72] : memref<72x512xf32, #tpu.memory_space<vmem>>, vector<8x512xf32>
    tpu.vector_store %arg9[%c56_71, %c0_72], %107 {strides = array<i32>} : memref<72x512xf32, #tpu.memory_space<vmem>>, vector<8x512xf32>,
    %c495_i32_73 = arith.constant 495 : i32
    %109 = tpu.dynamic_rotate %69 by %c495_i32_73 dim 1 : vector<8x512xf32>, i32 -> vector<8x512xf32>
    %c8_74 = arith.constant 8 : index
    %c0_75 = arith.constant 0 : index
    %110 = vector.load %arg7[%c8_74, %c0_75] : memref<9x512xf32, #tpu.memory_space<vmem>>, vector<1x512xf32>
    %111 = vector.broadcast %110 : vector<1x512xf32> to vector<8x512xf32>
    %112 = arith.mulf %109, %111 : vector<8x512xf32>
    %c64_76 = arith.constant 64 : index
    %c0_77 = arith.constant 0 : index
    %113 = vector.load %arg9[%c64_76, %c0_77] : memref<72x512xf32, #tpu.memory_space<vmem>>, vector<8x512xf32>
    tpu.vector_store %arg9[%c64_76, %c0_77], %112 {strides = array<i32>} : memref<72x512xf32, #tpu.memory_space<vmem>>, vector<8x512xf32>,
    %c0_78 = arith.constant 0 : index
    %c0_79 = arith.constant 0 : index
    %114 = vector.load %arg4[%c0_78, %c0_79] : memref<8x72xf32, #tpu.memory_space<vmem>>, vector<8x72xf32>
    %c0_80 = arith.constant 0 : index
    %c0_81 = arith.constant 0 : index
    %115 = vector.load %arg9[%c0_80, %c0_81] : memref<72x512xf32, #tpu.memory_space<vmem>>, vector<72x512xf32>
    %116 = arith.truncf %114 : vector<8x72xf32> to vector<8x72xbf16>
    %117 = arith.extf %116 : vector<8x72xbf16> to vector<8x72xf32>
    %118 = arith.subf %114, %117 : vector<8x72xf32>
    %119 = arith.truncf %118 : vector<8x72xf32> to vector<8x72xbf16>
    %120 = arith.truncf %115 : vector<72x512xf32> to vector<72x512xbf16>
    %121 = arith.extf %120 : vector<72x512xbf16> to vector<72x512xf32>
    %122 = arith.subf %115, %121 : vector<72x512xf32>
    %123 = arith.truncf %122 : vector<72x512xf32> to vector<72x512xbf16>
    %cst_82 = arith.constant dense<0.000000e+00> : vector<8x512xf32>
    %124 = tpu.matmul %116, %120, %cst_82 {dimension_numbers = #tpu.dot_dimension_numbers<[1], [0], [0], [1], [0, 0, 1, 1], [], []>} : vector<8x72xbf16>, vector<72x512xbf16>, vector<8x512xf32> -> vector<8x512xf32>
    %cst_83 = arith.constant dense<0.000000e+00> : vector<8x512xf32>
    %125 = tpu.matmul %119, %120, %cst_83 {dimension_numbers = #tpu.dot_dimension_numbers<[1], [0], [0], [1], [0, 0, 1, 1], [], []>} : vector<8x72xbf16>, vector<72x512xbf16>, vector<8x512xf32> -> vector<8x512xf32>
    %126 = arith.addf %124, %125 : vector<8x512xf32>
    %cst_84 = arith.constant dense<0.000000e+00> : vector<8x512xf32>
    %127 = tpu.matmul %116, %123, %cst_84 {dimension_numbers = #tpu.dot_dimension_numbers<[1], [0], [0], [1], [0, 0, 1, 1], [], []>} : vector<8x72xbf16>, vector<72x512xbf16>, vector<8x512xf32> -> vector<8x512xf32>
    %128 = arith.addf %126, %127 : vector<8x512xf32>
    %c0_85 = arith.constant 0 : index
    %c0_86 = arith.constant 0 : index
    %129 = vector.load %arg5[%c0_85, %c0_86] : memref<8x1xf32, #tpu.memory_space<vmem>>, vector<8x1xf32>
    %130 = vector.broadcast %129 : vector<8x1xf32> to vector<8x512xf32>
    %131 = arith.addf %128, %130 : vector<8x512xf32>
    %cst_87 = arith.constant 0.000000e+00 : f32
    %132 = vector.broadcast %cst_87 : f32 to vector<8x512xf32>
    %133 = arith.maximumf %131, %132 : vector<8x512xf32>
    %134 = vector.extract_strided_slice %133 {offsets = [0, 0], sizes = [4, 512], strides = [1, 1]} : vector<8x512xf32> to vector<4x512xf32>
    %c0_88 = arith.constant 0 : index
    %c0_89 = arith.constant 0 : index
    %c0_90 = arith.constant 0 : index
    %135 = vector.load %arg6[%c0_88, %c0_89, %c0_90] : memref<2x4x256xf32, #tpu.memory_space<vmem>>, vector<1x4x256xf32>
    %136 = vector.shape_cast %135 : vector<1x4x256xf32> to vector<4x256xf32>
    %c1_91 = arith.constant 1 : index
    %c0_92 = arith.constant 0 : index
    %c0_93 = arith.constant 0 : index
    %137 = vector.load %arg6[%c1_91, %c0_92, %c0_93] : memref<2x4x256xf32, #tpu.memory_space<vmem>>, vector<1x4x256xf32>
    %138 = vector.shape_cast %137 : vector<1x4x256xf32> to vector<4x256xf32>
    %139 = tpu.concatenate %136, %138 in 1 : vector<4x256xf32>, vector<4x256xf32> -> vector<4x512xf32>
    %140 = arith.addf %134, %139 : vector<4x512xf32>
    %cst_94 = arith.constant 3.33333325 : f32
    %141 = vector.broadcast %cst_94 : f32 to vector<4x512xf32>
    %142 = arith.mulf %140, %141 : vector<4x512xf32>
    %cst_95 = arith.constant dense<0xFF800000> : vector<512xf32>
    %143 = vector.multi_reduction <maximumf>, %142, %cst_95 [0] : vector<4x512xf32> to vector<512xf32>
    %144 = vector.shape_cast %143 : vector<512xf32> to vector<1x512xf32>
    %145 = vector.broadcast %144 : vector<1x512xf32> to vector<4x512xf32>
    %146 = arith.subf %142, %145 : vector<4x512xf32>
    %147 = math.exp %146 : vector<4x512xf32>
    %cst_96 = arith.constant dense<0.000000e+00> : vector<512xf32>
    %148 = vector.multi_reduction <add>, %147, %cst_96 [0] : vector<4x512xf32> to vector<512xf32>
    %149 = vector.shape_cast %148 : vector<512xf32> to vector<1x512xf32>
    %150 = tpu.reciprocal %149 {approx = true} : vector<1x512xf32> -> vector<1x512xf32>
    %151 = arith.mulf %149, %150 : vector<1x512xf32>
    %cst_97 = arith.constant 2.000000e+00 : f32
    %152 = vector.broadcast %cst_97 : f32 to vector<1x512xf32>
    %153 = arith.subf %152, %151 : vector<1x512xf32>
    %154 = arith.mulf %150, %153 : vector<1x512xf32>
    %155 = vector.broadcast %154 : vector<1x512xf32> to vector<4x512xf32>
    %156 = arith.mulf %147, %155 : vector<4x512xf32>
    %157 = vector.extract_strided_slice %156 {offsets = [0, 0], sizes = [1, 256], strides = [1, 1]} : vector<4x512xf32> to vector<1x256xf32>
    %158 = vector.extract_strided_slice %0 {offsets = [0, 0], sizes = [2, 256], strides = [1, 1]} : vector<8x256xf32> to vector<2x256xf32>
    %cst_98 = arith.constant 1.000000e+00 : f32
    %159 = vector.broadcast %cst_98 : f32 to vector<1x256xf32>
    %160 = arith.addf %159, %157 : vector<1x256xf32>
    %161 = vector.broadcast %160 : vector<1x256xf32> to vector<2x256xf32>
    %162 = arith.mulf %158, %161 : vector<2x256xf32>
    %c0_99 = arith.constant 0 : index
    %c0_100 = arith.constant 0 : index
    %163 = vector.load %arg8[%c0_99, %c0_100] : memref<8x256xf32, #tpu.memory_space<vmem>>, vector<2x256xf32>
    tpu.vector_store %arg8[%c0_99, %c0_100], %162 {strides = array<i32>} : memref<8x256xf32, #tpu.memory_space<vmem>>, vector<2x256xf32>,
    %164 = vector.extract_strided_slice %156 {offsets = [0, 256], sizes = [1, 256], strides = [1, 1]} : vector<4x512xf32> to vector<1x256xf32>
    %165 = vector.extract_strided_slice %0 {offsets = [2, 0], sizes = [2, 256], strides = [1, 1]} : vector<8x256xf32> to vector<2x256xf32>
    %cst_101 = arith.constant 1.000000e+00 : f32
    %166 = vector.broadcast %cst_101 : f32 to vector<1x256xf32>
    %167 = arith.addf %166, %164 : vector<1x256xf32>
    %168 = vector.broadcast %167 : vector<1x256xf32> to vector<2x256xf32>
    %169 = arith.mulf %165, %168 : vector<2x256xf32>
    %c2_102 = arith.constant 2 : index
    %c0_103 = arith.constant 0 : index
    %170 = vector.load %arg8[%c2_102, %c0_103] : memref<8x256xf32, #tpu.memory_space<vmem>>, vector<2x256xf32>
    tpu.vector_store %arg8[%c2_102, %c0_103], %169 {strides = array<i32>} : memref<8x256xf32, #tpu.memory_space<vmem>>, vector<2x256xf32>,
    %171 = vector.extract_strided_slice %156 {offsets = [1, 0], sizes = [1, 256], strides = [1, 1]} : vector<4x512xf32> to vector<1x256xf32>
    %172 = vector.extract_strided_slice %0 {offsets = [4, 0], sizes = [2, 256], strides = [1, 1]} : vector<8x256xf32> to vector<2x256xf32>
    %cst_104 = arith.constant 1.000000e+00 : f32
    %173 = vector.broadcast %cst_104 : f32 to vector<1x256xf32>
    %174 = arith.addf %173, %171 : vector<1x256xf32>
    %175 = vector.broadcast %174 : vector<1x256xf32> to vector<2x256xf32>
    %176 = arith.mulf %172, %175 : vector<2x256xf32>
    %c4_105 = arith.constant 4 : index
    %c0_106 = arith.constant 0 : index
    %177 = vector.load %arg8[%c4_105, %c0_106] : memref<8x256xf32, #tpu.memory_space<vmem>>, vector<2x256xf32>
    tpu.vector_store %arg8[%c4_105, %c0_106], %176 {strides = array<i32>} : memref<8x256xf32, #tpu.memory_space<vmem>>, vector<2x256xf32>,
    %178 = vector.extract_strided_slice %156 {offsets = [1, 256], sizes = [1, 256], strides = [1, 1]} : vector<4x512xf32> to vector<1x256xf32>
    %179 = vector.extract_strided_slice %0 {offsets = [6, 0], sizes = [2, 256], strides = [1, 1]} : vector<8x256xf32> to vector<2x256xf32>
    %cst_107 = arith.constant 1.000000e+00 : f32
    %180 = vector.broadcast %cst_107 : f32 to vector<1x256xf32>
    %181 = arith.addf %180, %178 : vector<1x256xf32>
    %182 = vector.broadcast %181 : vector<1x256xf32> to vector<2x256xf32>
    %183 = arith.mulf %179, %182 : vector<2x256xf32>
    %c6_108 = arith.constant 6 : index
    %c0_109 = arith.constant 0 : index
    %184 = vector.load %arg8[%c6_108, %c0_109] : memref<8x256xf32, #tpu.memory_space<vmem>>, vector<2x256xf32>
    tpu.vector_store %arg8[%c6_108, %c0_109], %183 {strides = array<i32>} : memref<8x256xf32, #tpu.memory_space<vmem>>, vector<2x256xf32>,
    return
  }
  func.func @transform_0(%arg0: i32) -> (i32, i32) {
    %c0_i32 = arith.constant 0 : i32
    %c0_i32_0 = arith.constant 0 : i32
    %c0_i32_1 = arith.constant 0 : i32
    return %c0_i32, %c0_i32_0 : i32, i32
  }
  func.func @transform_1(%arg0: i32) -> (i32, i32) {
    %c0_i32 = arith.constant 0 : i32
    %c0_i32_0 = arith.constant 0 : i32
    %c0_i32_1 = arith.constant 0 : i32
    return %c0_i32, %c0_i32_0 : i32, i32
  }
  func.func @transform_2(%arg0: i32) -> (i32, i32) {
    %c0_i32 = arith.constant 0 : i32
    %c0_i32_0 = arith.constant 0 : i32
    %c0_i32_1 = arith.constant 0 : i32
    return %c0_i32, %c0_i32_0 : i32, i32
  }
  func.func @transform_3(%arg0: i32) -> (i32, i32) {
    %c0_i32 = arith.constant 0 : i32
    %c0_i32_0 = arith.constant 0 : i32
    %c0_i32_1 = arith.constant 0 : i32
    return %c0_i32, %c0_i32_0 : i32, i32
  }
  func.func @transform_4(%arg0: i32) -> (i32, i32) {
    %c0_i32 = arith.constant 0 : i32
    %c0_i32_0 = arith.constant 0 : i32
    %c0_i32_1 = arith.constant 0 : i32
    return %c0_i32, %c0_i32_0 : i32, i32
  }
  func.func @transform_5(%arg0: i32) -> (i32, i32, i32) {
    %c0_i32 = arith.constant 0 : i32
    %c0_i32_0 = arith.constant 0 : i32
    %c0_i32_1 = arith.constant 0 : i32
    %c0_i32_2 = arith.constant 0 : i32
    return %c0_i32, %c0_i32_0, %c0_i32_1 : i32, i32, i32
  }
  func.func @transform_6(%arg0: i32) -> (i32, i32) {
    %c0_i32 = arith.constant 0 : i32
    %c0_i32_0 = arith.constant 0 : i32
    %c0_i32_1 = arith.constant 0 : i32
    return %c0_i32, %c0_i32_0 : i32, i32
  }
  func.func @transform_7(%arg0: i32) -> (i32, i32) {
    %c0_i32 = arith.constant 0 : i32
    %c0_i32_0 = arith.constant 0 : i32
    %c0_i32_1 = arith.constant 0 : i32
    return %c0_i32, %c0_i32_0 : i32, i32
  }
}

</mosaic_0001>

<llo_original>
// kernel: longshort_gate.1
$region0: #{longshort_gate.1}
  #allocation0 [shape = 'u32[]', space=smem, size = 0x4, offset = 0x4, fixed_abs, tag = 'smem constant byte address 0x4 - core index']
  #allocation1 [shape = 'u32[144,128]{1,0:T(1,128)}', space=vmem, size = 0x12000, scoped, tag = 'internal scratch']
  #allocation2 [shape = 'f32[72,512]{1,0:T(8,128)}', space=vmem, size = 0x24000, scoped, tag = 'scratch operand']
  %s0 = inlined_call_operand.vmem [shape: f32[8,256], index: 0, kind: input, shape index: {}]
  %s1 = inlined_call_operand.vmem [shape: f32[8,72], index: 1, kind: input, shape index: {}]
  %s2 = inlined_call_operand.vmem [shape: f32[8,1], index: 2, kind: input, shape index: {}]
  %s3 = inlined_call_operand.vmem [shape: f32[8,72], index: 3, kind: input, shape index: {}]
  %s4 = inlined_call_operand.vmem [shape: f32[8,1], index: 4, kind: input, shape index: {}]
  %s5 = inlined_call_operand.vmem [shape: f32[2,4,256], index: 5, kind: input, shape index: {}]
  %s6 = inlined_call_operand.vmem [shape: f32[9,512], index: 6, kind: input, shape index: {}]
  %s7 = inlined_call_operand.vmem [shape: f32[8,256], index: 7, kind: output, shape index: {}]
  %s8 = sld [smem:[#allocation0]]
  $region38: #{longshort_gate.1} parent=0
    _
  %s10 = ssub.s32 1, %s8
  %s11 = scalar_select 0, %s10, %s8
  // Predicated region
  $region2: #{longshort_gate.1} parent=0 // pred_check
    _
  $region3: #{longshort_gate.1} parent=0 // pred_check_branch
    %13 = sbr.rel (0) target = $region5
  $region4: #{longshort_gate.1} parent=0 // pred_region
    _
  $region5: #{longshort_gate.1} parent=0 // pred_fallthru
    _
  // Predicated region
  $region6: #{longshort_gate.1} parent=0 // pred_check
    _
  $region7: #{longshort_gate.1} parent=0 // pred_check_branch
    %15 = sbr.rel (0) target = $region9
  $region8: #{longshort_gate.1} parent=0 // pred_region
    _
  $region9: #{longshort_gate.1} parent=0 // pred_fallthru
    _
  // Predicated region
  $region10: #{longshort_gate.1} parent=0 // pred_check
    _
  $region11: #{longshort_gate.1} parent=0 // pred_check_branch
    %17 = sbr.rel (0) target = $region13
  $region12: #{longshort_gate.1} parent=0 // pred_region
    _
  $region13: #{longshort_gate.1} parent=0 // pred_fallthru
    _
  // Predicated region
  $region14: #{longshort_gate.1} parent=0 // pred_check
    _
  $region15: #{longshort_gate.1} parent=0 // pred_check_branch
    %19 = sbr.rel (0) target = $region17
  $region16: #{longshort_gate.1} parent=0 // pred_region
    _
  $region17: #{longshort_gate.1} parent=0 // pred_fallthru
    _
  // Predicated region
  $region18: #{longshort_gate.1} parent=0 // pred_check
    _
  $region19: #{longshort_gate.1} parent=0 // pred_check_branch
    %21 = sbr.rel (0) target = $region21
  $region20: #{longshort_gate.1} parent=0 // pred_region
    _
  $region21: #{longshort_gate.1} parent=0 // pred_fallthru
    _
  // Predicated region
  $region22: #{longshort_gate.1} parent=0 // pred_check
    _
  $region23: #{longshort_gate.1} parent=0 // pred_check_branch
    %23 = sbr.rel (0) target = $region25
  $region24: #{longshort_gate.1} parent=0 // pred_region
    _
  $region25: #{longshort_gate.1} parent=0 // pred_fallthru
    _
  // Predicated region
  $region26: #{longshort_gate.1} parent=0 // pred_check
    _
  $region27: #{longshort_gate.1} parent=0 // pred_check_branch
    %25 = sbr.rel (0) target = $region29
  $region28: #{longshort_gate.1} parent=0 // pred_region
    _
  $region29: #{longshort_gate.1} parent=0 // pred_fallthru
    _
  %v27 = vld [vmem:[%s0] sm:$0xff]
  %v28 = vld [vmem:[%s0 + $0x8] sm:$0xff]
  %v31 = vrot.slane %v27, 4
  %v32 = vrot.slane %v28, 4
  %35 = vst [vmem:[#allocation2] sm:$0xff] 0.0
  %36 = vst [vmem:[#allocation2 + $0x8] sm:$0xff] 0.0
  %37 = vst [vmem:[#allocation2 + $0x10] sm:$0xff] 0.0
  %38 = vst [vmem:[#allocation2 + $0x18] sm:$0xff] 0.0
  %39 = vst [vmem:[#allocation2 + $0x20] sm:$0xff] 0.0
  %40 = vst [vmem:[#allocation2 + $0x28] sm:$0xff] 0.0
  %41 = vst [vmem:[#allocation2 + $0x30] sm:$0xff] 0.0
  %42 = vst [vmem:[#allocation2 + $0x38] sm:$0xff] 0.0
  %43 = vst [vmem:[#allocation2 + $0x40] sm:$0xff] 0.0
  %44 = vst [vmem:[#allocation2 + $0x48] sm:$0xff] 0.0
  %45 = vst [vmem:[#allocation2 + $0x50] sm:$0xff] 0.0
  %46 = vst [vmem:[#allocation2 + $0x58] sm:$0xff] 0.0
  %47 = vst [vmem:[#allocation2 + $0x60] sm:$0xff] 0.0
  %48 = vst [vmem:[#allocation2 + $0x68] sm:$0xff] 0.0
  %49 = vst [vmem:[#allocation2 + $0x70] sm:$0xff] 0.0
  %50 = vst [vmem:[#allocation2 + $0x78] sm:$0xff] 0.0
  %51 = vst [vmem:[#allocation2 + $0x80] sm:$0xff] 0.0
  %52 = vst [vmem:[#allocation2 + $0x88] sm:$0xff] 0.0
  %53 = vst [vmem:[#allocation2 + $0x90] sm:$0xff] 0.0
  %54 = vst [vmem:[#allocation2 + $0x98] sm:$0xff] 0.0
  %55 = vst [vmem:[#allocation2 + $0xa0] sm:$0xff] 0.0
  %56 = vst [vmem:[#allocation2 + $0xa8] sm:$0xff] 0.0
  %57 = vst [vmem:[#allocation2 + $0xb0] sm:$0xff] 0.0
  %58 = vst [vmem:[#allocation2 + $0xb8] sm:$0xff] 0.0
  %59 = vst [vmem:[#allocation2 + $0xc0] sm:$0xff] 0.0
  %60 = vst [vmem:[#allocation2 + $0xc8] sm:$0xff] 0.0
  %61 = vst [vmem:[#allocation2 + $0xd0] sm:$0xff] 0.0
  %62 = vst [vmem:[#allocation2 + $0xd8] sm:$0xff] 0.0
  %63 = vst [vmem:[#allocation2 + $0xe0] sm:$0xff] 0.0
  %64 = vst [vmem:[#allocation2 + $0xe8] sm:$0xff] 0.0
  %65 = vst [vmem:[#allocation2 + $0xf0] sm:$0xff] 0.0
  %66 = vst [vmem:[#allocation2 + $0xf8] sm:$0xff] 0.0
  %67 = vst [vmem:[#allocation2 + $0x100] sm:$0xff] 0.0
  %68 = vst [vmem:[#allocation2 + $0x108] sm:$0xff] 0.0
  %69 = vst [vmem:[#allocation2 + $0x110] sm:$0xff] 0.0
  %70 = vst [vmem:[#allocation2 + $0x118] sm:$0xff] 0.0
  %71 = vrot.lane.b32.xlu0 %v27, 17
  %v72 = vpop.permute.xlu0 %71
  %73 = vrot.lane.b32.xlu0 %v28, 17
  %v74 = vpop.permute.xlu0 %73
  %75 = vrot.lane.b32.xlu0 %v31, 17
  %v76 = vpop.permute.xlu0 %75
  %77 = vrot.lane.b32.xlu0 %v32, 17
  %v78 = vpop.permute.xlu0 %77
  %v79 = vlaneseq
  %v80 = vand.u32 %v79, 127
  %vm81 = vcmp.lt.s32.totalorder %v80, 17
  %v82 = vsel %vm81, %v76, %v78
  %v83 = vsel %vm81, %v74, %v76
  %v84 = vsel %vm81, %v72, %v74
  %v85 = vsel %vm81, %v78, %v72
  %v86 = vld [vmem:[%s6] ss:$8 sm:$0xf]
  %v88 = vlaneseq
  %v89 = vshrl.u32 %v88, 7
  %v90 = vsub.s32 0, %v89
  %v91 = vrot.slane %v86, %v90
  %v92 = vlaneseq
  %v93 = vshrl.u32 %v92, 7
  %v94 = vsub.s32 1, %v93
  %v95 = vrot.slane %v86, %v94
  %v96 = vlaneseq
  %v97 = vshrl.u32 %v96, 7
  %v98 = vsub.s32 2, %v97
  %v99 = vrot.slane %v86, %v98
  %v100 = vlaneseq
  %v101 = vshrl.u32 %v100, 7
  %v102 = vsub.s32 3, %v101
  %v103 = vrot.slane %v86, %v102
  %v108 = vmul.f32 %v85, %v91
  %v109 = vmul.f32 %v84, %v95
  %v110 = vmul.f32 %v83, %v99
  %v111 = vmul.f32 %v82, %v103
  %112 = vst [vmem:[#allocation2] sm:$0xf] %v108
  %113 = vst [vmem:[#allocation2 + $0x8] sm:$0xf] %v109
  %114 = vst [vmem:[#allocation2 + $0x10] sm:$0xf] %v110
  %115 = vst [vmem:[#allocation2 + $0x18] sm:$0xf] %v111
  %116 = vrot.lane.b32.xlu0 %v27, 16
  %v117 = vpop.permute.xlu0 %116
  %118 = vrot.lane.b32.xlu0 %v28, 16
  %v119 = vpop.permute.xlu0 %118
  %120 = vrot.lane.b32.xlu0 %v31, 16
  %v121 = vpop.permute.xlu0 %120
  %122 = vrot.lane.b32.xlu0 %v32, 16
  %v123 = vpop.permute.xlu0 %122
  %vm124 = vcmp.lt.s32.totalorder %v80, 16
  %v125 = vsel %vm124, %v121, %v123
  %v126 = vsel %vm124, %v119, %v121
  %v127 = vsel %vm124, %v117, %v119
  %v128 = vsel %vm124, %v123, %v117
  %s129 = scalar_lea.vmem %s6, 1
  %v130 = vld [vmem:[%s129] ss:$8 sm:$0xf]
  %v132 = vlaneseq
  %v133 = vshrl.u32 %v132, 7
  %v134 = vsub.s32 0, %v133
  %v135 = vrot.slane %v130, %v134
  %v136 = vlaneseq
  %v137 = vshrl.u32 %v136, 7
  %v138 = vsub.s32 1, %v137
  %v139 = vrot.slane %v130, %v138
  %v140 = vlaneseq
  %v141 = vshrl.u32 %v140, 7
  %v142 = vsub.s32 2, %v141
  %v143 = vrot.slane %v130, %v142
  %v144 = vlaneseq
  %v145 = vshrl.u32 %v144, 7
  %v146 = vsub.s32 3, %v145
  %v147 = vrot.slane %v130, %v146
  %v152 = vmul.f32 %v128, %v135
  %v153 = vmul.f32 %v127, %v139
  %v154 = vmul.f32 %v126, %v143
  %v155 = vmul.f32 %v125, %v147
  %156 = vst [vmem:[#allocation2 + $0x20] sm:$0xf] %v152
  %157 = vst [vmem:[#allocation2 + $0x28] sm:$0xf] %v153
  %158 = vst [vmem:[#allocation2 + $0x30] sm:$0xf] %v154
  %159 = vst [vmem:[#allocation2 + $0x38] sm:$0xf] %v155
  %160 = vrot.lane.b32.xlu0 %v27, 15
  %v161 = vpop.permute.xlu0 %160
  %162 = vrot.lane.b32.xlu0 %v28, 15
  %v163 = vpop.permute.xlu0 %162
  %164 = vrot.lane.b32.xlu0 %v31, 15
  %v165 = vpop.permute.xlu0 %164
  %166 = vrot.lane.b32.xlu0 %v32, 15
  %v167 = vpop.permute.xlu0 %166
  %vm168 = vcmp.lt.s32.totalorder %v80, 15
  %v169 = vsel %vm168, %v165, %v167
  %v170 = vsel %vm168, %v163, %v165
  %v171 = vsel %vm168, %v161, %v163
  %v172 = vsel %vm168, %v167, %v161
  %s173 = scalar_lea.vmem %s6, 2
  %v174 = vld [vmem:[%s173] ss:$8 sm:$0xf]
  %v176 = vlaneseq
  %v177 = vshrl.u32 %v176, 7
  %v178 = vsub.s32 0, %v177
  %v179 = vrot.slane %v174, %v178
  %v180 = vlaneseq
  %v181 = vshrl.u32 %v180, 7
  %v182 = vsub.s32 1, %v181
  %v183 = vrot.slane %v174, %v182
  %v184 = vlaneseq
  %v185 = vshrl.u32 %v184, 7
  %v186 = vsub.s32 2, %v185
  %v187 = vrot.slane %v174, %v186
  %v188 = vlaneseq
  %v189 = vshrl.u32 %v188, 7
  %v190 = vsub.s32 3, %v189
  %v191 = vrot.slane %v174, %v190
  %v196 = vmul.f32 %v172, %v179
  %v197 = vmul.f32 %v171, %v183
  %v198 = vmul.f32 %v170, %v187
  %v199 = vmul.f32 %v169, %v191
  %200 = vst [vmem:[#allocation2 + $0x40] sm:$0xf] %v196
  %201 = vst [vmem:[#allocation2 + $0x48] sm:$0xf] %v197
  %202 = vst [vmem:[#allocation2 + $0x50] sm:$0xf] %v198
  %203 = vst [vmem:[#allocation2 + $0x58] sm:$0xf] %v199
  %204 = vrot.lane.b32.xlu0 %v27, 1
  %v205 = vpop.permute.xlu0 %204
  %206 = vrot.lane.b32.xlu0 %v28, 1
  %v207 = vpop.permute.xlu0 %206
  %208 = vrot.lane.b32.xlu0 %v31, 1
  %v209 = vpop.permute.xlu0 %208
  %210 = vrot.lane.b32.xlu0 %v32, 1
  %v211 = vpop.permute.xlu0 %210
  %vm212 = vcmp.lt.s32.totalorder %v80, 1
  %v213 = vsel %vm212, %v209, %v211
  %v214 = vsel %vm212, %v207, %v209
  %v215 = vsel %vm212, %v205, %v207
  %v216 = vsel %vm212, %v211, %v205
  %s217 = scalar_lea.vmem %s6, 3
  %v218 = vld [vmem:[%s217] ss:$8 sm:$0xf]
  %v220 = vlaneseq
  %v221 = vshrl.u32 %v220, 7
  %v222 = vsub.s32 0, %v221
  %v223 = vrot.slane %v218, %v222
  %v224 = vlaneseq
  %v225 = vshrl.u32 %v224, 7
  %v226 = vsub.s32 1, %v225
  %v227 = vrot.slane %v218, %v226
  %v228 = vlaneseq
  %v229 = vshrl.u32 %v228, 7
  %v230 = vsub.s32 2, %v229
  %v231 = vrot.slane %v218, %v230
  %v232 = vlaneseq
  %v233 = vshrl.u32 %v232, 7
  %v234 = vsub.s32 3, %v233
  %v235 = vrot.slane %v218, %v234
  %v240 = vmul.f32 %v216, %v223
  %v241 = vmul.f32 %v215, %v227
  %v242 = vmul.f32 %v214, %v231
  %v243 = vmul.f32 %v213, %v235
  %244 = vst [vmem:[#allocation2 + $0x60] sm:$0xf] %v240
  %245 = vst [vmem:[#allocation2 + $0x68] sm:$0xf] %v241
  %246 = vst [vmem:[#allocation2 + $0x70] sm:$0xf] %v242
  %247 = vst [vmem:[#allocation2 + $0x78] sm:$0xf] %v243
  %s248 = scalar_lea.vmem %s6, 4
  %v249 = vld [vmem:[%s248] ss:$8 sm:$0xf]
  %v251 = vlaneseq
  %v252 = vshrl.u32 %v251, 7
  %v253 = vsub.s32 0, %v252
  %v254 = vrot.slane %v249, %v253
  %v255 = vlaneseq
  %v256 = vshrl.u32 %v255, 7
  %v257 = vsub.s32 1, %v256
  %v258 = vrot.slane %v249, %v257
  %v259 = vlaneseq
  %v260 = vshrl.u32 %v259, 7
  %v261 = vsub.s32 2, %v260
  %v262 = vrot.slane %v249, %v261
  %v263 = vlaneseq
  %v264 = vshrl.u32 %v263, 7
  %v265 = vsub.s32 3, %v264
  %v266 = vrot.slane %v249, %v265
  %v271 = vmul.f32 %v27, %v254
  %v272 = vmul.f32 %v28, %v258
  %v273 = vmul.f32 %v31, %v262
  %v274 = vmul.f32 %v32, %v266
  %275 = vst [vmem:[#allocation2 + $0x80] sm:$0xf] %v271
  %276 = vst [vmem:[#allocation2 + $0x88] sm:$0xf] %v272
  %277 = vst [vmem:[#allocation2 + $0x90] sm:$0xf] %v273
  %278 = vst [vmem:[#allocation2 + $0x98] sm:$0xf] %v274
  %279 = vrot.lane.b32.xlu0 %v27, 127
  %v280 = vpop.permute.xlu0 %279
  %281 = vrot.lane.b32.xlu0 %v28, 127
  %v282 = vpop.permute.xlu0 %281
  %283 = vrot.lane.b32.xlu0 %v31, 127
  %v284 = vpop.permute.xlu0 %283
  %285 = vrot.lane.b32.xlu0 %v32, 127
  %v286 = vpop.permute.xlu0 %285
  %vm287 = vcmp.lt.s32.totalorder %v80, 127
  %v288 = vsel %vm287, %v284, %v286
  %v289 = vsel %vm287, %v282, %v284
  %v290 = vsel %vm287, %v280, %v282
  %v291 = vsel %vm287, %v286, %v280
  %s292 = scalar_lea.vmem %s6, 5
  %v293 = vld [vmem:[%s292] ss:$8 sm:$0xf]
  %v295 = vlaneseq
  %v296 = vshrl.u32 %v295, 7
  %v297 = vsub.s32 0, %v296
  %v298 = vrot.slane %v293, %v297
  %v299 = vlaneseq
  %v300 = vshrl.u32 %v299, 7
  %v301 = vsub.s32 1, %v300
  %v302 = vrot.slane %v293, %v301
  %v303 = vlaneseq
  %v304 = vshrl.u32 %v303, 7
  %v305 = vsub.s32 2, %v304
  %v306 = vrot.slane %v293, %v305
  %v307 = vlaneseq
  %v308 = vshrl.u32 %v307, 7
  %v309 = vsub.s32 3, %v308
  %v310 = vrot.slane %v293, %v309
  %v315 = vmul.f32 %v290, %v298
  %v316 = vmul.f32 %v289, %v302
  %v317 = vmul.f32 %v288, %v306
  %v318 = vmul.f32 %v291, %v310
  %319 = vst [vmem:[#allocation2 + $0xa0] sm:$0xf] %v315
  %320 = vst [vmem:[#allocation2 + $0xa8] sm:$0xf] %v316
  %321 = vst [vmem:[#allocation2 + $0xb0] sm:$0xf] %v317
  %322 = vst [vmem:[#allocation2 + $0xb8] sm:$0xf] %v318
  %323 = vrot.lane.b32.xlu0 %v27, 113
  %v324 = vpop.permute.xlu0 %323
  %325 = vrot.lane.b32.xlu0 %v28, 113
  %v326 = vpop.permute.xlu0 %325
  %327 = vrot.lane.b32.xlu0 %v31, 113
  %v328 = vpop.permute.xlu0 %327
  %329 = vrot.lane.b32.xlu0 %v32, 113
  %v330 = vpop.permute.xlu0 %329
  %vm331 = vcmp.lt.s32.totalorder %v80, 113
  %v332 = vsel %vm331, %v328, %v330
  %v333 = vsel %vm331, %v326, %v328
  %v334 = vsel %vm331, %v324, %v326
  %v335 = vsel %vm331, %v330, %v324
  %s336 = scalar_lea.vmem %s6, 6
  %v337 = vld [vmem:[%s336] ss:$8 sm:$0xf]
  %v339 = vlaneseq
  %v340 = vshrl.u32 %v339, 7
  %v341 = vsub.s32 0, %v340
  %v342 = vrot.slane %v337, %v341
  %v343 = vlaneseq
  %v344 = vshrl.u32 %v343, 7
  %v345 = vsub.s32 1, %v344
  %v346 = vrot.slane %v337, %v345
  %v347 = vlaneseq
  %v348 = vshrl.u32 %v347, 7
  %v349 = vsub.s32 2, %v348
  %v350 = vrot.slane %v337, %v349
  %v351 = vlaneseq
  %v352 = vshrl.u32 %v351, 7
  %v353 = vsub.s32 3, %v352
  %v354 = vrot.slane %v337, %v353
  %v359 = vmul.f32 %v334, %v342
  %v360 = vmul.f32 %v333, %v346
  %v361 = vmul.f32 %v332, %v350
  %v362 = vmul.f32 %v335, %v354
  %363 = vst [vmem:[#allocation2 + $0xc0] sm:$0xf] %v359
  %364 = vst [vmem:[#allocation2 + $0xc8] sm:$0xf] %v360
  %365 = vst [vmem:[#allocation2 + $0xd0] sm:$0xf] %v361
  %366 = vst [vmem:[#allocation2 + $0xd8] sm:$0xf] %v362
  %367 = vrot.lane.b32.xlu0 %v27, 112
  %v368 = vpop.permute.xlu0 %367
  %369 = vrot.lane.b32.xlu0 %v28, 112
  %v370 = vpop.permute.xlu0 %369
  %371 = vrot.lane.b32.xlu0 %v31, 112
  %v372 = vpop.permute.xlu0 %371
  %373 = vrot.lane.b32.xlu0 %v32, 112
  %v374 = vpop.permute.xlu0 %373
  %vm375 = vcmp.lt.s32.totalorder %v80, 112
  %v376 = vsel %vm375, %v372, %v374
  %v377 = vsel %vm375, %v370, %v372
  %v378 = vsel %vm375, %v368, %v370
  %v379 = vsel %vm375, %v374, %v368
  %s380 = scalar_lea.vmem %s6, 7
  %v381 = vld [vmem:[%s380] ss:$8 sm:$0xf]
  %v383 = vlaneseq
  %v384 = vshrl.u32 %v383, 7
  %v385 = vsub.s32 0, %v384
  %v386 = vrot.slane %v381, %v385
  %v387 = vlaneseq
  %v388 = vshrl.u32 %v387, 7
  %v389 = vsub.s32 1, %v388
  %v390 = vrot.slane %v381, %v389
  %v391 = vlaneseq
  %v392 = vshrl.u32 %v391, 7
  %v393 = vsub.s32 2, %v392
  %v394 = vrot.slane %v381, %v393
  %v395 = vlaneseq
  %v396 = vshrl.u32 %v395, 7
  %v397 = vsub.s32 3, %v396
  %v398 = vrot.slane %v381, %v397
  %v403 = vmul.f32 %v378, %v386
  %v404 = vmul.f32 %v377, %v390
  %v405 = vmul.f32 %v376, %v394
  %v406 = vmul.f32 %v379, %v398
  %407 = vst [vmem:[#allocation2 + $0xe0] sm:$0xf] %v403
  %408 = vst [vmem:[#allocation2 + $0xe8] sm:$0xf] %v404
  %409 = vst [vmem:[#allocation2 + $0xf0] sm:$0xf] %v405
  %410 = vst [vmem:[#allocation2 + $0xf8] sm:$0xf] %v406
  %411 = vrot.lane.b32.xlu0 %v27, 111
  %v412 = vpop.permute.xlu0 %411
  %413 = vrot.lane.b32.xlu0 %v28, 111
  %v414 = vpop.permute.xlu0 %413
  %415 = vrot.lane.b32.xlu0 %v31, 111
  %v416 = vpop.permute.xlu0 %415
  %417 = vrot.lane.b32.xlu0 %v32, 111
  %v418 = vpop.permute.xlu0 %417
  %vm419 = vcmp.lt.s32.totalorder %v80, 111
  %v420 = vsel %vm419, %v416, %v418
  %v421 = vsel %vm419, %v414, %v416
  %v422 = vsel %vm419, %v412, %v414
  %v423 = vsel %vm419, %v418, %v412
  %s424 = scalar_lea.vmem %s6, 32
  %v425 = vld [vmem:[%s424] ss:$8 sm:$0xf]
  %v427 = vlaneseq
  %v428 = vshrl.u32 %v427, 7
  %v429 = vsub.s32 0, %v428
  %v430 = vrot.slane %v425, %v429
  %v431 = vlaneseq
  %v432 = vshrl.u32 %v431, 7
  %v433 = vsub.s32 1, %v432
  %v434 = vrot.slane %v425, %v433
  %v435 = vlaneseq
  %v436 = vshrl.u32 %v435, 7
  %v437 = vsub.s32 2, %v436
  %v438 = vrot.slane %v425, %v437
  %v439 = vlaneseq
  %v440 = vshrl.u32 %v439, 7
  %v441 = vsub.s32 3, %v440
  %v442 = vrot.slane %v425, %v441
  %v447 = vmul.f32 %v422, %v430
  %v448 = vmul.f32 %v421, %v434
  %v449 = vmul.f32 %v420, %v438
  %v450 = vmul.f32 %v423, %v442
  %451 = vst [vmem:[#allocation2 + $0x100] sm:$0xf] %v447
  %452 = vst [vmem:[#allocation2 + $0x108] sm:$0xf] %v448
  %453 = vst [vmem:[#allocation2 + $0x110] sm:$0xf] %v449
  %454 = vst [vmem:[#allocation2 + $0x118] sm:$0xf] %v450
  %v455 = vld [vmem:[%s1] sm:$0xff]
  %v456 = vld [vmem:[#allocation2] sm:$0xff]
  %v457 = vld [vmem:[#allocation2 + $0x8] sm:$0xff]
  %v458 = vld [vmem:[#allocation2 + $0x10] sm:$0xff]
  %v459 = vld [vmem:[#allocation2 + $0x18] sm:$0xff]
  %v460 = vld [vmem:[#allocation2 + $0x20] sm:$0xff]
  %v461 = vld [vmem:[#allocation2 + $0x28] sm:$0xff]
  %v462 = vld [vmem:[#allocation2 + $0x30] sm:$0xff]
  %v463 = vld [vmem:[#allocation2 + $0x38] sm:$0xff]
  %v464 = vld [vmem:[#allocation2 + $0x40] sm:$0xff]
  %v465 = vld [vmem:[#allocation2 + $0x48] sm:$0xff]
  %v466 = vld [vmem:[#allocation2 + $0x50] sm:$0xff]
  %v467 = vld [vmem:[#allocation2 + $0x58] sm:$0xff]
  %v468 = vld [vmem:[#allocation2 + $0x60] sm:$0xff]
  %v469 = vld [vmem:[#allocation2 + $0x68] sm:$0xff]
  %v470 = vld [vmem:[#allocation2 + $0x70] sm:$0xff]
  %v471 = vld [vmem:[#allocation2 + $0x78] sm:$0xff]
  %v472 = vld [vmem:[#allocation2 + $0x80] sm:$0xff]
  %v473 = vld [vmem:[#allocation2 + $0x88] sm:$0xff]
  %v474 = vld [vmem:[#allocation2 + $0x90] sm:$0xff]
  %v475 = vld [vmem:[#allocation2 + $0x98] sm:$0xff]
  %v476 = vld [vmem:[#allocation2 + $0xa0] sm:$0xff]
  %v477 = vld [vmem:[#allocation2 + $0xa8] sm:$0xff]
  %v478 = vld [vmem:[#allocation2 + $0xb0] sm:$0xff]
  %v479 = vld [vmem:[#allocation2 + $0xb8] sm:$0xff]
  %v480 = vld [vmem:[#allocation2 + $0xc0] sm:$0xff]
  %v481 = vld [vmem:[#allocation2 + $0xc8] sm:$0xff]
  %v482 = vld [vmem:[#allocation2 + $0xd0] sm:$0xff]
  %v483 = vld [vmem:[#allocation2 + $0xd8] sm:$0xff]
  %v484 = vld [vmem:[#allocation2 + $0xe0] sm:$0xff]
  %v485 = vld [vmem:[#allocation2 + $0xe8] sm:$0xff]
  %v486 = vld [vmem:[#allocation2 + $0xf0] sm:$0xff]
  %v487 = vld [vmem:[#allocation2 + $0xf8] sm:$0xff]
  %v488 = vld [vmem:[#allocation2 + $0x100] sm:$0xff]
  %v489 = vld [vmem:[#allocation2 + $0x108] sm:$0xff]
  %v490 = vld [vmem:[#allocation2 + $0x110] sm:$0xff]
  %v491 = vld [vmem:[#allocation2 + $0x118] sm:$0xff]
  %v492 = vpack.c.bf16 %v455, %v455
  %v493 = vunpack.c.l.bf16 %v492
  %v494 = vsub.f32 %v455, %v493
  %v495 = vpack.c.bf16 %v494, %v494
  %v496 = vpack.c.bf16 %v460, %v456
  %v497 = vpack.c.bf16 %v461, %v457
  %v498 = vpack.c.bf16 %v462, %v458
  %v499 = vpack.c.bf16 %v463, %v459
  %v500 = vpack.c.bf16 %v468, %v464
  %v501 = vpack.c.bf16 %v469, %v465
  %v502 = vpack.c.bf16 %v470, %v466
  %v503 = vpack.c.bf16 %v471, %v467
  %v504 = vpack.c.bf16 %v476, %v472
  %v505 = vpack.c.bf16 %v477, %v473
  %v506 = vpack.c.bf16 %v478, %v474
  %v507 = vpack.c.bf16 %v479, %v475
  %v508 = vpack.c.bf16 %v484, %v480
  %v509 = vpack.c.bf16 %v485, %v481
  %v510 = vpack.c.bf16 %v486, %v482
  %v511 = vpack.c.bf16 %v487, %v483
  %v512 = vpack.c.bf16 %v488, %v488
  %v513 = vpack.c.bf16 %v489, %v489
  %v514 = vpack.c.bf16 %v490, %v490
  %v515 = vpack.c.bf16 %v491, %v491
  %v516 = vunpack.c.l.bf16 %v496
  %v517 = vunpack.c.l.bf16 %v497
  %v518 = vunpack.c.l.bf16 %v498
  %v519 = vunpack.c.l.bf16 %v499
  %v520 = vunpack.c.h.bf16 %v496
  %v521 = vunpack.c.h.bf16 %v497
  %v522 = vunpack.c.h.bf16 %v498
  %v523 = vunpack.c.h.bf16 %v499
  %v524 = vunpack.c.l.bf16 %v500
  %v525 = vunpack.c.l.bf16 %v501
  %v526 = vunpack.c.l.bf16 %v502
  %v527 = vunpack.c.l.bf16 %v503
  %v528 = vunpack.c.h.bf16 %v500
  %v529 = vunpack.c.h.bf16 %v501
  %v530 = vunpack.c.h.bf16 %v502
  %v531 = vunpack.c.h.bf16 %v503
  %v532 = vunpack.c.l.bf16 %v504
  %v533 = vunpack.c.l.bf16 %v505
  %v534 = vunpack.c.l.bf16 %v506
  %v535 = vunpack.c.l.bf16 %v507
  %v536 = vunpack.c.h.bf16 %v504
  %v537 = vunpack.c.h.bf16 %v505
  %v538 = vunpack.c.h.bf16 %v506
  %v539 = vunpack.c.h.bf16 %v507
  %v540 = vunpack.c.l.bf16 %v508
  %v541 = vunpack.c.l.bf16 %v509
  %v542 = vunpack.c.l.bf16 %v510
  %v543 = vunpack.c.l.bf16 %v511
  %v544 = vunpack.c.h.bf16 %v508
  %v545 = vunpack.c.h.bf16 %v509
  %v546 = vunpack.c.h.bf16 %v510
  %v547 = vunpack.c.h.bf16 %v511
  %v548 = vunpack.c.l.bf16 %v512
  %v549 = vunpack.c.l.bf16 %v513
  %v550 = vunpack.c.l.bf16 %v514
  %v551 = vunpack.c.l.bf16 %v515
  %v552 = vsub.f32 %v456, %v516
  %v553 = vsub.f32 %v457, %v517
  %v554 = vsub.f32 %v458, %v518
  %v555 = vsub.f32 %v459, %v519
  %v556 = vsub.f32 %v460, %v520
  %v557 = vsub.f32 %v461, %v521
  %v558 = vsub.f32 %v462, %v522
  %v559 = vsub.f32 %v463, %v523
  %v560 = vsub.f32 %v464, %v524
  %v561 = vsub.f32 %v465, %v525
  %v562 = vsub.f32 %v466, %v526
  %v563 = vsub.f32 %v467, %v527
  %v564 = vsub.f32 %v468, %v528
  %v565 = vsub.f32 %v469, %v529
  %v566 = vsub.f32 %v470, %v530
  %v567 = vsub.f32 %v471, %v531
  %v568 = vsub.f32 %v472, %v532
  %v569 = vsub.f32 %v473, %v533
  %v570 = vsub.f32 %v474, %v534
  %v571 = vsub.f32 %v475, %v535
  %v572 = vsub.f32 %v476, %v536
  %v573 = vsub.f32 %v477, %v537
  %v574 = vsub.f32 %v478, %v538
  %v575 = vsub.f32 %v479, %v539
  %v576 = vsub.f32 %v480, %v540
  %v577 = vsub.f32 %v481, %v541
  %v578 = vsub.f32 %v482, %v542
  %v579 = vsub.f32 %v483, %v543
  %v580 = vsub.f32 %v484, %v544
  %v581 = vsub.f32 %v485, %v545
  %v582 = vsub.f32 %v486, %v546
  %v583 = vsub.f32 %v487, %v547
  %v584 = vsub.f32 %v488, %v548
  %v585 = vsub.f32 %v489, %v549
  %v586 = vsub.f32 %v490, %v550
  %v587 = vsub.f32 %v491, %v551
  %v588 = vpack.c.bf16 %v556, %v552
  %v589 = vpack.c.bf16 %v557, %v553
  %v590 = vpack.c.bf16 %v558, %v554
  %v591 = vpack.c.bf16 %v559, %v555
  %v592 = vpack.c.bf16 %v564, %v560
  %v593 = vpack.c.bf16 %v565, %v561
  %v594 = vpack.c.bf16 %v566, %v562
  %v595 = vpack.c.bf16 %v567, %v563
  %v596 = vpack.c.bf16 %v572, %v568
  %v597 = vpack.c.bf16 %v573, %v569
  %v598 = vpack.c.bf16 %v574, %v570
  %v599 = vpack.c.bf16 %v575, %v571
  %v600 = vpack.c.bf16 %v580, %v576
  %v601 = vpack.c.bf16 %v581, %v577
  %v602 = vpack.c.bf16 %v582, %v578
  %v603 = vpack.c.bf16 %v583, %v579
  %v604 = vpack.c.bf16 %v584, %v584
  %v605 = vpack.c.bf16 %v585, %v585
  %v606 = vpack.c.bf16 %v586, %v586
  %v607 = vpack.c.bf16 %v587, %v587
  %vm608 = vcmask 588800
  %v610 = vsel %vm608, %v495, 0
  %vm612 = vcmask 1043456
  %v614 = vsel %vm612, %v512, 0
  %v617 = vsel %vm612, %v513, 0
  %v620 = vsel %vm612, %v514, 0
  %v623 = vsel %vm612, %v515, 0
  %625 = vmatprep.subr.bf16.mxu0 %v497
  %626 = vmatpush1.bf16.msra.mxu0 %v496
  %627 = vmatprep.subr.bf16.mxu0 %v501
  %628 = vmatpush1.bf16.msra.mxu0 %v500
  %629 = vmatprep.subr.bf16.mxu0 %v505
  %630 = vmatpush1.bf16.msra.mxu0 %v504
  %631 = vmatprep.subr.bf16.mxu0 %v509
  %632 = vmatpush1.bf16.msra.mxu0 %v508
  %633 = vmatprep.subr.bf16.mxu0 %v617
  %634 = vmatpush1.bf16.msra.mxu0 %v614
  %635 = vmatprep.subr.bf16.mxu0 0
  %636 = vmatpush1.bf16.msra.mxu0 0
  %637 = vmatprep.subr.bf16.mxu0 0
  %638 = vmatpush1.bf16.msra.mxu0 0
  %639 = vmatprep.subr.bf16.mxu0 0
  %640 = vmatpush1.bf16.msra.mxu0 0
  %641 = vmatprep.subr.bf16.mxu0 0
  %642 = vmatpush1.bf16.msra.mxu0 0
  %643 = vmatprep.subr.bf16.mxu0 0
  %644 = vmatpush1.bf16.msra.mxu0 0
  %645 = vmatprep.subr.bf16.mxu0 0
  %646 = vmatpush1.bf16.msra.mxu0 0
  %647 = vmatprep.subr.bf16.mxu0 0
  %648 = vmatpush1.bf16.msra.mxu0 0
  %649 = vmatprep.subr.bf16.mxu0 0
  %650 = vmatpush1.bf16.msra.mxu0 0
  %651 = vmatprep.subr.bf16.mxu0 0
  %652 = vmatpush1.bf16.msra.mxu0 0
  %653 = vmatprep.subr.bf16.mxu0 0
  %654 = vmatpush1.bf16.msra.mxu0 0
  %655 = vmatprep.subr.bf16.mxu0 0
  %656 = vmatpush1.bf16.msra.mxu0 0
  %657 = vmatprep.mubr.bf16.mxu0 0
  %658 = vmatmul.mubr.bf16.gmra.mrb[0].mxu0 %v610
  %v659 = vpop.f32.mrb[0].mxu0
  %v660 = vadd.f32 0.0, %v659
  %v661 = vpop.f32.mrb[0].mxu0
  %v662 = vadd.f32 0.0, %v661
  %v663 = vpop.f32.mrb[0].mxu0
  %v664 = vpop.f32.mrb[0].mxu0
  %665 = vdwg.mxu0
  %666 = vmatprep.subr.bf16.mxu0 %v499
  %667 = vmatpush1.bf16.msra.mxu0 %v498
  %668 = vmatprep.subr.bf16.mxu0 %v503
  %669 = vmatpush1.bf16.msra.mxu0 %v502
  %670 = vmatprep.subr.bf16.mxu0 %v507
  %671 = vmatpush1.bf16.msra.mxu0 %v506
  %672 = vmatprep.subr.bf16.mxu0 %v511
  %673 = vmatpush1.bf16.msra.mxu0 %v510
  %674 = vmatprep.subr.bf16.mxu0 %v623
  %675 = vmatpush1.bf16.msra.mxu0 %v620
  %676 = vmatprep.subr.bf16.mxu0 0
  %677 = vmatpush1.bf16.msra.mxu0 0
  %678 = vmatprep.subr.bf16.mxu0 0
  %679 = vmatpush1.bf16.msra.mxu0 0
  %680 = vmatprep.subr.bf16.mxu0 0
  %681 = vmatpush1.bf16.msra.mxu0 0
  %682 = vmatprep.subr.bf16.mxu0 0
  %683 = vmatpush1.bf16.msra.mxu0 0
  %684 = vmatprep.subr.bf16.mxu0 0
  %685 = vmatpush1.bf16.msra.mxu0 0
  %686 = vmatprep.subr.bf16.mxu0 0
  %687 = vmatpush1.bf16.msra.mxu0 0
  %688 = vmatprep.subr.bf16.mxu0 0
  %689 = vmatpush1.bf16.msra.mxu0 0
  %690 = vmatprep.subr.bf16.mxu0 0
  %691 = vmatpush1.bf16.msra.mxu0 0
  %692 = vmatprep.subr.bf16.mxu0 0
  %693 = vmatpush1.bf16.msra.mxu0 0
  %694 = vmatprep.subr.bf16.mxu0 0
  %695 = vmatpush1.bf16.msra.mxu0 0
  %696 = vmatprep.subr.bf16.mxu0 0
  %697 = vmatpush1.bf16.msra.mxu0 0
  %698 = vmatprep.mubr.bf16.mxu0 0
  %699 = vmatmul.mubr.bf16.gmra.mrb[0].mxu0 %v610
  %v700 = vpop.f32.mrb[0].mxu0
  %v701 = vadd.f32 0.0, %v700
  %v702 = vpop.f32.mrb[0].mxu0
  %v703 = vadd.f32 0.0, %v702
  %v704 = vpop.f32.mrb[0].mxu0
  %v705 = vpop.f32.mrb[0].mxu0
  %706 = vdwg.mxu0
  %v708 = vsel %vm608, %v492, 0
  %710 = vmatprep.subr.bf16.mxu0 %v497
  %711 = vmatpush1.bf16.msra.mxu0 %v496
  %712 = vmatprep.subr.bf16.mxu0 %v501
  %713 = vmatpush1.bf16.msra.mxu0 %v500
  %714 = vmatprep.subr.bf16.mxu0 %v505
  %715 = vmatpush1.bf16.msra.mxu0 %v504
  %716 = vmatprep.subr.bf16.mxu0 %v509
  %717 = vmatpush1.bf16.msra.mxu0 %v508
  %718 = vmatprep.subr.bf16.mxu0 %v617
  %719 = vmatpush1.bf16.msra.mxu0 %v614
  %720 = vmatprep.subr.bf16.mxu0 0
  %721 = vmatpush1.bf16.msra.mxu0 0
  %722 = vmatprep.subr.bf16.mxu0 0
  %723 = vmatpush1.bf16.msra.mxu0 0
  %724 = vmatprep.subr.bf16.mxu0 0
  %725 = vmatpush1.bf16.msra.mxu0 0
  %726 = vmatprep.subr.bf16.mxu0 0
  %727 = vmatpush1.bf16.msra.mxu0 0
  %728 = vmatprep.subr.bf16.mxu0 0
  %729 = vmatpush1.bf16.msra.mxu0 0
  %730 = vmatprep.subr.bf16.mxu0 0
  %731 = vmatpush1.bf16.msra.mxu0 0
  %732 = vmatprep.subr.bf16.mxu0 0
  %733 = vmatpush1.bf16.msra.mxu0 0
  %734 = vmatprep.subr.bf16.mxu0 0
  %735 = vmatpush1.bf16.msra.mxu0 0
  %736 = vmatprep.subr.bf16.mxu0 0
  %737 = vmatpush1.bf16.msra.mxu0 0
  %738 = vmatprep.subr.bf16.mxu0 0
  %739 = vmatpush1.bf16.msra.mxu0 0
  %740 = vmatprep.subr.bf16.mxu0 0
  %741 = vmatpush1.bf16.msra.mxu0 0
  %742 = vmatprep.mubr.bf16.mxu0 0
  %743 = vmatmul.mubr.bf16.gmra.mrb[0].mxu0 %v708
  %v744 = vpop.f32.mrb[0].mxu0
  %v745 = vadd.f32 %v660, %v744
  %v746 = vpop.f32.mrb[0].mxu0
  %v747 = vadd.f32 %v662, %v746
  %v748 = vpop.f32.mrb[0].mxu0
  %v749 = vpop.f32.mrb[0].mxu0
  %750 = vdwg.mxu0
  %751 = vmatprep.subr.bf16.mxu0 %v499
  %752 = vmatpush1.bf16.msra.mxu0 %v498
  %753 = vmatprep.subr.bf16.mxu0 %v503
  %754 = vmatpush1.bf16.msra.mxu0 %v502
  %755 = vmatprep.subr.bf16.mxu0 %v507
  %756 = vmatpush1.bf16.msra.mxu0 %v506
  %757 = vmatprep.subr.bf16.mxu0 %v511
  %758 = vmatpush1.bf16.msra.mxu0 %v510
  %759 = vmatprep.subr.bf16.mxu0 %v623
  %760 = vmatpush1.bf16.msra.mxu0 %v620
  %761 = vmatprep.subr.bf16.mxu0 0
  %762 = vmatpush1.bf16.msra.mxu0 0
  %763 = vmatprep.subr.bf16.mxu0 0
  %764 = vmatpush1.bf16.msra.mxu0 0
  %765 = vmatprep.subr.bf16.mxu0 0
  %766 = vmatpush1.bf16.msra.mxu0 0
  %767 = vmatprep.subr.bf16.mxu0 0
  %768 = vmatpush1.bf16.msra.mxu0 0
  %769 = vmatprep.subr.bf16.mxu0 0
  %770 = vmatpush1.bf16.msra.mxu0 0
  %771 = vmatprep.subr.bf16.mxu0 0
  %772 = vmatpush1.bf16.msra.mxu0 0
  %773 = vmatprep.subr.bf16.mxu0 0
  %774 = vmatpush1.bf16.msra.mxu0 0
  %775 = vmatprep.subr.bf16.mxu0 0
  %776 = vmatpush1.bf16.msra.mxu0 0
  %777 = vmatprep.subr.bf16.mxu0 0
  %778 = vmatpush1.bf16.msra.mxu0 0
  %779 = vmatprep.subr.bf16.mxu0 0
  %780 = vmatpush1.bf16.msra.mxu0 0
  %781 = vmatprep.subr.bf16.mxu0 0
  %782 = vmatpush1.bf16.msra.mxu0 0
  %783 = vmatprep.mubr.bf16.mxu0 0
  %784 = vmatmul.mubr.bf16.gmra.mrb[0].mxu0 %v708
  %v785 = vpop.f32.mrb[0].mxu0
  %v786 = vadd.f32 %v701, %v785
  %v787 = vpop.f32.mrb[0].mxu0
  %v788 = vadd.f32 %v703, %v787
  %v789 = vpop.f32.mrb[0].mxu0
  %v790 = vpop.f32.mrb[0].mxu0
  %791 = vdwg.mxu0
  %v793 = vsel %vm612, %v604, 0
  %v796 = vsel %vm612, %v605, 0
  %v799 = vsel %vm612, %v606, 0
  %v802 = vsel %vm612, %v607, 0
  %804 = vmatprep.subr.bf16.mxu0 %v589
  %805 = vmatpush1.bf16.msra.mxu0 %v588
  %806 = vmatprep.subr.bf16.mxu0 %v593
  %807 = vmatpush1.bf16.msra.mxu0 %v592
  %808 = vmatprep.subr.bf16.mxu0 %v597
  %809 = vmatpush1.bf16.msra.mxu0 %v596
  %810 = vmatprep.subr.bf16.mxu0 %v601
  %811 = vmatpush1.bf16.msra.mxu0 %v600
  %812 = vmatprep.subr.bf16.mxu0 %v796
  %813 = vmatpush1.bf16.msra.mxu0 %v793
  %814 = vmatprep.subr.bf16.mxu0 0
  %815 = vmatpush1.bf16.msra.mxu0 0
  %816 = vmatprep.subr.bf16.mxu0 0
  %817 = vmatpush1.bf16.msra.mxu0 0
  %818 = vmatprep.subr.bf16.mxu0 0
  %819 = vmatpush1.bf16.msra.mxu0 0
  %820 = vmatprep.subr.bf16.mxu0 0
  %821 = vmatpush1.bf16.msra.mxu0 0
  %822 = vmatprep.subr.bf16.mxu0 0
  %823 = vmatpush1.bf16.msra.mxu0 0
  %824 = vmatprep.subr.bf16.mxu0 0
  %825 = vmatpush1.bf16.msra.mxu0 0
  %826 = vmatprep.subr.bf16.mxu0 0
  %827 = vmatpush1.bf16.msra.mxu0 0
  %828 = vmatprep.subr.bf16.mxu0 0
  %829 = vmatpush1.bf16.msra.mxu0 0
  %830 = vmatprep.subr.bf16.mxu0 0
  %831 = vmatpush1.bf16.msra.mxu0 0
  %832 = vmatprep.subr.bf16.mxu0 0
  %833 = vmatpush1.bf16.msra.mxu0 0
  %834 = vmatprep.subr.bf16.mxu0 0
  %835 = vmatpush1.bf16.msra.mxu0 0
  %836 = vmatprep.mubr.bf16.mxu0 0
  %837 = vmatmul.mubr.bf16.gmra.mrb[0].mxu0 %v708
  %v838 = vpop.f32.mrb[0].mxu0
  %v839 = vadd.f32 0.0, %v838
  %v840 = vpop.f32.mrb[0].mxu0
  %v841 = vadd.f32 0.0, %v840
  %v842 = vpop.f32.mrb[0].mxu0
  %v843 = vpop.f32.mrb[0].mxu0
  %844 = vdwg.mxu0
  %845 = vmatprep.subr.bf16.mxu0 %v591
  %846 = vmatpush1.bf16.msra.mxu0 %v590
  %847 = vmatprep.subr.bf16.mxu0 %v595
  %848 = vmatpush1.bf16.msra.mxu0 %v594
  %849 = vmatprep.subr.bf16.mxu0 %v599
  %850 = vmatpush1.bf16.msra.mxu0 %v598
  %851 = vmatprep.subr.bf16.mxu0 %v603
  %852 = vmatpush1.bf16.msra.mxu0 %v602
  %853 = vmatprep.subr.bf16.mxu0 %v802
  %854 = vmatpush1.bf16.msra.mxu0 %v799
  %855 = vmatprep.subr.bf16.mxu0 0
  %856 = vmatpush1.bf16.msra.mxu0 0
  %857 = vmatprep.subr.bf16.mxu0 0
  %858 = vmatpush1.bf16.msra.mxu0 0
  %859 = vmatprep.subr.bf16.mxu0 0
  %860 = vmatpush1.bf16.msra.mxu0 0
  %861 = vmatprep.subr.bf16.mxu0 0
  %862 = vmatpush1.bf16.msra.mxu0 0
  %863 = vmatprep.subr.bf16.mxu0 0
  %864 = vmatpush1.bf16.msra.mxu0 0
  %865 = vmatprep.subr.bf16.mxu0 0
  %866 = vmatpush1.bf16.msra.mxu0 0
  %867 = vmatprep.subr.bf16.mxu0 0
  %868 = vmatpush1.bf16.msra.mxu0 0
  %869 = vmatprep.subr.bf16.mxu0 0
  %870 = vmatpush1.bf16.msra.mxu0 0
  %871 = vmatprep.subr.bf16.mxu0 0
  %872 = vmatpush1.bf16.msra.mxu0 0
  %873 = vmatprep.subr.bf16.mxu0 0
  %874 = vmatpush1.bf16.msra.mxu0 0
  %875 = vmatprep.subr.bf16.mxu0 0
  %876 = vmatpush1.bf16.msra.mxu0 0
  %877 = vmatprep.mubr.bf16.mxu0 0
  %878 = vmatmul.mubr.bf16.gmra.mrb[0].mxu0 %v708
  %v879 = vpop.f32.mrb[0].mxu0
  %v880 = vadd.f32 0.0, %v879
  %v881 = vpop.f32.mrb[0].mxu0
  %v882 = vadd.f32 0.0, %v881
  %v883 = vpop.f32.mrb[0].mxu0
  %v884 = vpop.f32.mrb[0].mxu0
  %885 = vdwg.mxu0
  %v886 = vadd.f32 %v745, %v839
  %v887 = vadd.f32 %v747, %v841
  %v888 = vadd.f32 %v786, %v880
  %v889 = vadd.f32 %v788, %v882
  %v890 = vld [vmem:[%s2] sm:$0xff]
  %892 = vset.pattern.permute.xlu0 0
  %893 = vperm.xlu0 %892, %v890
  %v894 = vpop.permute.xlu0 %893
  %v896 = vadd.f32 %v886, %v894
  %v897 = vadd.f32 %v887, %v894
  %v898 = vadd.f32 %v888, %v894
  %v899 = vadd.f32 %v889, %v894
  %v900 = vmax.f32 %v896, 0.0
  %v901 = vmax.f32 %v897, 0.0
  %v902 = vmax.f32 %v898, 0.0
  %v903 = vmax.f32 %v899, 0.0
  %904 = vrot.lane.b32.xlu0 %v900, 17
  %v905 = vpop.permute.xlu0 %904
  %906 = vrot.lane.b32.xlu0 %v901, 17
  %v907 = vpop.permute.xlu0 %906
  %908 = vrot.lane.b32.xlu0 %v902, 17
  %v909 = vpop.permute.xlu0 %908
  %910 = vrot.lane.b32.xlu0 %v903, 17
  %v911 = vpop.permute.xlu0 %910
  %v912 = vsel %vm81, %v909, %v911
  %v913 = vsel %vm81, %v907, %v909
  %v914 = vsel %vm81, %v905, %v907
  %v915 = vsel %vm81, %v911, %v905
  %v916 = vld [vmem:[%s6] ss:$8 sm:$0xf]
  %v918 = vlaneseq
  %v919 = vshrl.u32 %v918, 7
  %v920 = vsub.s32 0, %v919
  %v921 = vrot.slane %v916, %v920
  %v922 = vlaneseq
  %v923 = vshrl.u32 %v922, 7
  %v924 = vsub.s32 1, %v923
  %v925 = vrot.slane %v916, %v924
  %v926 = vlaneseq
  %v927 = vshrl.u32 %v926, 7
  %v928 = vsub.s32 2, %v927
  %v929 = vrot.slane %v916, %v928
  %v930 = vlaneseq
  %v931 = vshrl.u32 %v930, 7
  %v932 = vsub.s32 3, %v931
  %v933 = vrot.slane %v916, %v932
  %v938 = vmul.f32 %v915, %v921
  %v939 = vmul.f32 %v914, %v925
  %v940 = vmul.f32 %v913, %v929
  %v941 = vmul.f32 %v912, %v933
  %942 = vst [vmem:[#allocation2] sm:$0xff] %v938
  %943 = vst [vmem:[#allocation2 + $0x8] sm:$0xff] %v939
  %944 = vst [vmem:[#allocation2 + $0x10] sm:$0xff] %v940
  %945 = vst [vmem:[#allocation2 + $0x18] sm:$0xff] %v941
  %946 = vrot.lane.b32.xlu0 %v900, 16
  %v947 = vpop.permute.xlu0 %946
  %948 = vrot.lane.b32.xlu0 %v901, 16
  %v949 = vpop.permute.xlu0 %948
  %950 = vrot.lane.b32.xlu0 %v902, 16
  %v951 = vpop.permute.xlu0 %950
  %952 = vrot.lane.b32.xlu0 %v903, 16
  %v953 = vpop.permute.xlu0 %952
  %v954 = vsel %vm124, %v951, %v953
  %v955 = vsel %vm124, %v949, %v951
  %v956 = vsel %vm124, %v947, %v949
  %v957 = vsel %vm124, %v953, %v947
  %v958 = vld [vmem:[%s129] ss:$8 sm:$0xf]
  %v960 = vlaneseq
  %v961 = vshrl.u32 %v960, 7
  %v962 = vsub.s32 0, %v961
  %v963 = vrot.slane %v958, %v962
  %v964 = vlaneseq
  %v965 = vshrl.u32 %v964, 7
  %v966 = vsub.s32 1, %v965
  %v967 = vrot.slane %v958, %v966
  %v968 = vlaneseq
  %v969 = vshrl.u32 %v968, 7
  %v970 = vsub.s32 2, %v969
  %v971 = vrot.slane %v958, %v970
  %v972 = vlaneseq
  %v973 = vshrl.u32 %v972, 7
  %v974 = vsub.s32 3, %v973
  %v975 = vrot.slane %v958, %v974
  %v980 = vmul.f32 %v957, %v963
  %v981 = vmul.f32 %v956, %v967
  %v982 = vmul.f32 %v955, %v971
  %v983 = vmul.f32 %v954, %v975
  %984 = vst [vmem:[#allocation2 + $0x20] sm:$0xff] %v980
  %985 = vst [vmem:[#allocation2 + $0x28] sm:$0xff] %v981
  %986 = vst [vmem:[#allocation2 + $0x30] sm:$0xff] %v982
  %987 = vst [vmem:[#allocation2 + $0x38] sm:$0xff] %v983
  %988 = vrot.lane.b32.xlu0 %v900, 15
  %v989 = vpop.permute.xlu0 %988
  %990 = vrot.lane.b32.xlu0 %v901, 15
  %v991 = vpop.permute.xlu0 %990
  %992 = vrot.lane.b32.xlu0 %v902, 15
  %v993 = vpop.permute.xlu0 %992
  %994 = vrot.lane.b32.xlu0 %v903, 15
  %v995 = vpop.permute.xlu0 %994
  %v996 = vsel %vm168, %v993, %v995
  %v997 = vsel %vm168, %v991, %v993
  %v998 = vsel %vm168, %v989, %v991
  %v999 = vsel %vm168, %v995, %v989
  %v1000 = vld [vmem:[%s173] ss:$8 sm:$0xf]
  %v1002 = vlaneseq
  %v1003 = vshrl.u32 %v1002, 7
  %v1004 = vsub.s32 0, %v1003
  %v1005 = vrot.slane %v1000, %v1004
  %v1006 = vlaneseq
  %v1007 = vshrl.u32 %v1006, 7
  %v1008 = vsub.s32 1, %v1007
  %v1009 = vrot.slane %v1000, %v1008
  %v1010 = vlaneseq
  %v1011 = vshrl.u32 %v1010, 7
  %v1012 = vsub.s32 2, %v1011
  %v1013 = vrot.slane %v1000, %v1012
  %v1014 = vlaneseq
  %v1015 = vshrl.u32 %v1014, 7
  %v1016 = vsub.s32 3, %v1015
  %v1017 = vrot.slane %v1000, %v1016
  %v1022 = vmul.f32 %v999, %v1005
  %v1023 = vmul.f32 %v998, %v1009
  %v1024 = vmul.f32 %v997, %v1013
  %v1025 = vmul.f32 %v996, %v1017
  %1026 = vst [vmem:[#allocation2 + $0x40] sm:$0xff] %v1022
  %1027 = vst [vmem:[#allocation2 + $0x48] sm:$0xff] %v1023
  %1028 = vst [vmem:[#allocation2 + $0x50] sm:$0xff] %v1024
  %1029 = vst [vmem:[#allocation2 + $0x58] sm:$0xff] %v1025
  %1030 = vrot.lane.b32.xlu0 %v900, 1
  %v1031 = vpop.permute.xlu0 %1030
  %1032 = vrot.lane.b32.xlu0 %v901, 1
  %v1033 = vpop.permute.xlu0 %1032
  %1034 = vrot.lane.b32.xlu0 %v902, 1
  %v1035 = vpop.permute.xlu0 %1034
  %1036 = vrot.lane.b32.xlu0 %v903, 1
  %v1037 = vpop.permute.xlu0 %1036
  %v1038 = vsel %vm212, %v1035, %v1037
  %v1039 = vsel %vm212, %v1033, %v1035
  %v1040 = vsel %vm212, %v1031, %v1033
  %v1041 = vsel %vm212, %v1037, %v1031
  %v1042 = vld [vmem:[%s217] ss:$8 sm:$0xf]
  %v1044 = vlaneseq
  %v1045 = vshrl.u32 %v1044, 7
  %v1046 = vsub.s32 0, %v1045
  %v1047 = vrot.slane %v1042, %v1046
  %v1048 = vlaneseq
  %v1049 = vshrl.u32 %v1048, 7
  %v1050 = vsub.s32 1, %v1049
  %v1051 = vrot.slane %v1042, %v1050
  %v1052 = vlaneseq
  %v1053 = vshrl.u32 %v1052, 7
  %v1054 = vsub.s32 2, %v1053
  %v1055 = vrot.slane %v1042, %v1054
  %v1056 = vlaneseq
  %v1057 = vshrl.u32 %v1056, 7
  %v1058 = vsub.s32 3, %v1057
  %v1059 = vrot.slane %v1042, %v1058
  %v1064 = vmul.f32 %v1041, %v1047
  %v1065 = vmul.f32 %v1040, %v1051
  %v1066 = vmul.f32 %v1039, %v1055
  %v1067 = vmul.f32 %v1038, %v1059
  %1068 = vst [vmem:[#allocation2 + $0x60] sm:$0xff] %v1064
  %1069 = vst [vmem:[#allocation2 + $0x68] sm:$0xff] %v1065
  %1070 = vst [vmem:[#allocation2 + $0x70] sm:$0xff] %v1066
  %1071 = vst [vmem:[#allocation2 + $0x78] sm:$0xff] %v1067
  %v1072 = vld [vmem:[%s248] ss:$8 sm:$0xf]
  %v1074 = vlaneseq
  %v1075 = vshrl.u32 %v1074, 7
  %v1076 = vsub.s32 0, %v1075
  %v1077 = vrot.slane %v1072, %v1076
  %v1078 = vlaneseq
  %v1079 = vshrl.u32 %v1078, 7
  %v1080 = vsub.s32 1, %v1079
  %v1081 = vrot.slane %v1072, %v1080
  %v1082 = vlaneseq
  %v1083 = vshrl.u32 %v1082, 7
  %v1084 = vsub.s32 2, %v1083
  %v1085 = vrot.slane %v1072, %v1084
  %v1086 = vlaneseq
  %v1087 = vshrl.u32 %v1086, 7
  %v1088 = vsub.s32 3, %v1087
  %v1089 = vrot.slane %v1072, %v1088
  %v1094 = vmul.f32 %v900, %v1077
  %v1095 = vmul.f32 %v901, %v1081
  %v1096 = vmul.f32 %v902, %v1085
  %v1097 = vmul.f32 %v903, %v1089
  %1098 = vst [vmem:[#allocation2 + $0x80] sm:$0xff] %v1094
  %1099 = vst [vmem:[#allocation2 + $0x88] sm:$0xff] %v1095
  %1100 = vst [vmem:[#allocation2 + $0x90] sm:$0xff] %v1096
  %1101 = vst [vmem:[#allocation2 + $0x98] sm:$0xff] %v1097
  %1102 = vrot.lane.b32.xlu0 %v900, 127
  %v1103 = vpop.permute.xlu0 %1102
  %1104 = vrot.lane.b32.xlu0 %v901, 127
  %v1105 = vpop.permute.xlu0 %1104
  %1106 = vrot.lane.b32.xlu0 %v902, 127
  %v1107 = vpop.permute.xlu0 %1106
  %1108 = vrot.lane.b32.xlu0 %v903, 127
  %v1109 = vpop.permute.xlu0 %1108
  %v1110 = vsel %vm287, %v1107, %v1109
  %v1111 = vsel %vm287, %v1105, %v1107
  %v1112 = vsel %vm287, %v1103, %v1105
  %v1113 = vsel %vm287, %v1109, %v1103
  %v1114 = vld [vmem:[%s292] ss:$8 sm:$0xf]
  %v1116 = vlaneseq
  %v1117 = vshrl.u32 %v1116, 7
  %v1118 = vsub.s32 0, %v1117
  %v1119 = vrot.slane %v1114, %v1118
  %v1120 = vlaneseq
  %v1121 = vshrl.u32 %v1120, 7
  %v1122 = vsub.s32 1, %v1121
  %v1123 = vrot.slane %v1114, %v1122
  %v1124 = vlaneseq
  %v1125 = vshrl.u32 %v1124, 7
  %v1126 = vsub.s32 2, %v1125
  %v1127 = vrot.slane %v1114, %v1126
  %v1128 = vlaneseq
  %v1129 = vshrl.u32 %v1128, 7
  %v1130 = vsub.s32 3, %v1129
  %v1131 = vrot.slane %v1114, %v1130
  %v1136 = vmul.f32 %v1112, %v1119
  %v1137 = vmul.f32 %v1111, %v1123
  %v1138 = vmul.f32 %v1110, %v1127
  %v1139 = vmul.f32 %v1113, %v1131
  %1140 = vst [vmem:[#allocation2 + $0xa0] sm:$0xff] %v1136
  %1141 = vst [vmem:[#allocation2 + $0xa8] sm:$0xff] %v1137
  %1142 = vst [vmem:[#allocation2 + $0xb0] sm:$0xff] %v1138
  %1143 = vst [vmem:[#allocation2 + $0xb8] sm:$0xff] %v1139
  %1144 = vrot.lane.b32.xlu0 %v900, 113
  %v1145 = vpop.permute.xlu0 %1144
  %1146 = vrot.lane.b32.xlu0 %v901, 113
  %v1147 = vpop.permute.xlu0 %1146
  %1148 = vrot.lane.b32.xlu0 %v902, 113
  %v1149 = vpop.permute.xlu0 %1148
  %1150 = vrot.lane.b32.xlu0 %v903, 113
  %v1151 = vpop.permute.xlu0 %1150
  %v1152 = vsel %vm331, %v1149, %v1151
  %v1153 = vsel %vm331, %v1147, %v1149
  %v1154 = vsel %vm331, %v1145, %v1147
  %v1155 = vsel %vm331, %v1151, %v1145
  %v1156 = vld [vmem:[%s336] ss:$8 sm:$0xf]
  %v1158 = vlaneseq
  %v1159 = vshrl.u32 %v1158, 7
  %v1160 = vsub.s32 0, %v1159
  %v1161 = vrot.slane %v1156, %v1160
  %v1162 = vlaneseq
  %v1163 = vshrl.u32 %v1162, 7
  %v1164 = vsub.s32 1, %v1163
  %v1165 = vrot.slane %v1156, %v1164
  %v1166 = vlaneseq
  %v1167 = vshrl.u32 %v1166, 7
  %v1168 = vsub.s32 2, %v1167
  %v1169 = vrot.slane %v1156, %v1168
  %v1170 = vlaneseq
  %v1171 = vshrl.u32 %v1170, 7
  %v1172 = vsub.s32 3, %v1171
  %v1173 = vrot.slane %v1156, %v1172
  %v1178 = vmul.f32 %v1154, %v1161
  %v1179 = vmul.f32 %v1153, %v1165
  %v1180 = vmul.f32 %v1152, %v1169
  %v1181 = vmul.f32 %v1155, %v1173
  %1182 = vst [vmem:[#allocation2 + $0xc0] sm:$0xff] %v1178
  %1183 = vst [vmem:[#allocation2 + $0xc8] sm:$0xff] %v1179
  %1184 = vst [vmem:[#allocation2 + $0xd0] sm:$0xff] %v1180
  %1185 = vst [vmem:[#allocation2 + $0xd8] sm:$0xff] %v1181
  %1186 = vrot.lane.b32.xlu0 %v900, 112
  %v1187 = vpop.permute.xlu0 %1186
  %1188 = vrot.lane.b32.xlu0 %v901, 112
  %v1189 = vpop.permute.xlu0 %1188
  %1190 = vrot.lane.b32.xlu0 %v902, 112
  %v1191 = vpop.permute.xlu0 %1190
  %1192 = vrot.lane.b32.xlu0 %v903, 112
  %v1193 = vpop.permute.xlu0 %1192
  %v1194 = vsel %vm375, %v1191, %v1193
  %v1195 = vsel %vm375, %v1189, %v1191
  %v1196 = vsel %vm375, %v1187, %v1189
  %v1197 = vsel %vm375, %v1193, %v1187
  %v1198 = vld [vmem:[%s380] ss:$8 sm:$0xf]
  %v1200 = vlaneseq
  %v1201 = vshrl.u32 %v1200, 7
  %v1202 = vsub.s32 0, %v1201
  %v1203 = vrot.slane %v1198, %v1202
  %v1204 = vlaneseq
  %v1205 = vshrl.u32 %v1204, 7
  %v1206 = vsub.s32 1, %v1205
  %v1207 = vrot.slane %v1198, %v1206
  %v1208 = vlaneseq
  %v1209 = vshrl.u32 %v1208, 7
  %v1210 = vsub.s32 2, %v1209
  %v1211 = vrot.slane %v1198, %v1210
  %v1212 = vlaneseq
  %v1213 = vshrl.u32 %v1212, 7
  %v1214 = vsub.s32 3, %v1213
  %v1215 = vrot.slane %v1198, %v1214
  %v1220 = vmul.f32 %v1196, %v1203
  %v1221 = vmul.f32 %v1195, %v1207
  %v1222 = vmul.f32 %v1194, %v1211
  %v1223 = vmul.f32 %v1197, %v1215
  %1224 = vst [vmem:[#allocation2 + $0xe0] sm:$0xff] %v1220
  %1225 = vst [vmem:[#allocation2 + $0xe8] sm:$0xff] %v1221
  %1226 = vst [vmem:[#allocation2 + $0xf0] sm:$0xff] %v1222
  %1227 = vst [vmem:[#allocation2 + $0xf8] sm:$0xff] %v1223
  %1228 = vrot.lane.b32.xlu0 %v900, 111
  %v1229 = vpop.permute.xlu0 %1228
  %1230 = vrot.lane.b32.xlu0 %v901, 111
  %v1231 = vpop.permute.xlu0 %1230
  %1232 = vrot.lane.b32.xlu0 %v902, 111
  %v1233 = vpop.permute.xlu0 %1232
  %1234 = vrot.lane.b32.xlu0 %v903, 111
  %v1235 = vpop.permute.xlu0 %1234
  %v1236 = vsel %vm419, %v1233, %v1235
  %v1237 = vsel %vm419, %v1231, %v1233
  %v1238 = vsel %vm419, %v1229, %v1231
  %v1239 = vsel %vm419, %v1235, %v1229
  %v1240 = vld [vmem:[%s424] ss:$8 sm:$0xf]
  %v1242 = vlaneseq
  %v1243 = vshrl.u32 %v1242, 7
  %v1244 = vsub.s32 0, %v1243
  %v1245 = vrot.slane %v1240, %v1244
  %v1246 = vlaneseq
  %v1247 = vshrl.u32 %v1246, 7
  %v1248 = vsub.s32 1, %v1247
  %v1249 = vrot.slane %v1240, %v1248
  %v1250 = vlaneseq
  %v1251 = vshrl.u32 %v1250, 7
  %v1252 = vsub.s32 2, %v1251
  %v1253 = vrot.slane %v1240, %v1252
  %v1254 = vlaneseq
  %v1255 = vshrl.u32 %v1254, 7
  %v1256 = vsub.s32 3, %v1255
  %v1257 = vrot.slane %v1240, %v1256
  %v1262 = vmul.f32 %v1238, %v1245
  %v1263 = vmul.f32 %v1237, %v1249
  %v1264 = vmul.f32 %v1236, %v1253
  %v1265 = vmul.f32 %v1239, %v1257
  %1266 = vst [vmem:[#allocation2 + $0x100] sm:$0xff] %v1262
  %1267 = vst [vmem:[#allocation2 + $0x108] sm:$0xff] %v1263
  %1268 = vst [vmem:[#allocation2 + $0x110] sm:$0xff] %v1264
  %1269 = vst [vmem:[#allocation2 + $0x118] sm:$0xff] %v1265
  %v1270 = vld [vmem:[%s3] sm:$0xff]
  %v1271 = vld [vmem:[#allocation2] sm:$0xff]
  %v1272 = vld [vmem:[#allocation2 + $0x8] sm:$0xff]
  %v1273 = vld [vmem:[#allocation2 + $0x10] sm:$0xff]
  %v1274 = vld [vmem:[#allocation2 + $0x18] sm:$0xff]
  %v1275 = vld [vmem:[#allocation2 + $0x20] sm:$0xff]
  %v1276 = vld [vmem:[#allocation2 + $0x28] sm:$0xff]
  %v1277 = vld [vmem:[#allocation2 + $0x30] sm:$0xff]
  %v1278 = vld [vmem:[#allocation2 + $0x38] sm:$0xff]
  %v1279 = vld [vmem:[#allocation2 + $0x40] sm:$0xff]
  %v1280 = vld [vmem:[#allocation2 + $0x48] sm:$0xff]
  %v1281 = vld [vmem:[#allocation2 + $0x50] sm:$0xff]
  %v1282 = vld [vmem:[#allocation2 + $0x58] sm:$0xff]
  %v1283 = vld [vmem:[#allocation2 + $0x60] sm:$0xff]
  %v1284 = vld [vmem:[#allocation2 + $0x68] sm:$0xff]
  %v1285 = vld [vmem:[#allocation2 + $0x70] sm:$0xff]
  %v1286 = vld [vmem:[#allocation2 + $0x78] sm:$0xff]
  %v1287 = vld [vmem:[#allocation2 + $0x80] sm:$0xff]
  %v1288 = vld [vmem:[#allocation2 + $0x88] sm:$0xff]
  %v1289 = vld [vmem:[#allocation2 + $0x90] sm:$0xff]
  %v1290 = vld [vmem:[#allocation2 + $0x98] sm:$0xff]
  %v1291 = vld [vmem:[#allocation2 + $0xa0] sm:$0xff]
  %v1292 = vld [vmem:[#allocation2 + $0xa8] sm:$0xff]
  %v1293 = vld [vmem:[#allocation2 + $0xb0] sm:$0xff]
  %v1294 = vld [vmem:[#allocation2 + $0xb8] sm:$0xff]
  %v1295 = vld [vmem:[#allocation2 + $0xc0] sm:$0xff]
  %v1296 = vld [vmem:[#allocation2 + $0xc8] sm:$0xff]
  %v1297 = vld [vmem:[#allocation2 + $0xd0] sm:$0xff]
  %v1298 = vld [vmem:[#allocation2 + $0xd8] sm:$0xff]
  %v1299 = vld [vmem:[#allocation2 + $0xe0] sm:$0xff]
  %v1300 = vld [vmem:[#allocation2 + $0xe8] sm:$0xff]
  %v1301 = vld [vmem:[#allocation2 + $0xf0] sm:$0xff]
  %v1302 = vld [vmem:[#allocation2 + $0xf8] sm:$0xff]
  %v1303 = vld [vmem:[#allocation2 + $0x100] sm:$0xff]
  %v1304 = vld [vmem:[#allocation2 + $0x108] sm:$0xff]
  %v1305 = vld [vmem:[#allocation2 + $0x110] sm:$0xff]
  %v1306 = vld [vmem:[#allocation2 + $0x118] sm:$0xff]
  %v1307 = vpack.c.bf16 %v1270, %v1270
  %v1308 = vunpack.c.l.bf16 %v1307
  %v1309 = vsub.f32 %v1270, %v1308
  %v1310 = vpack.c.bf16 %v1309, %v1309
  %v1311 = vpack.c.bf16 %v1275, %v1271
  %v1312 = vpack.c.bf16 %v1276, %v1272
  %v1313 = vpack.c.bf16 %v1277, %v1273
  %v1314 = vpack.c.bf16 %v1278, %v1274
  %v1315 = vpack.c.bf16 %v1283, %v1279
  %v1316 = vpack.c.bf16 %v1284, %v1280
  %v1317 = vpack.c.bf16 %v1285, %v1281
  %v1318 = vpack.c.bf16 %v1286, %v1282
  %v1319 = vpack.c.bf16 %v1291, %v1287
  %v1320 = vpack.c.bf16 %v1292, %v1288
  %v1321 = vpack.c.bf16 %v1293, %v1289
  %v1322 = vpack.c.bf16 %v1294, %v1290
  %v1323 = vpack.c.bf16 %v1299, %v1295
  %v1324 = vpack.c.bf16 %v1300, %v1296
  %v1325 = vpack.c.bf16 %v1301, %v1297
  %v1326 = vpack.c.bf16 %v1302, %v1298
  %v1327 = vpack.c.bf16 %v1303, %v1303
  %v1328 = vpack.c.bf16 %v1304, %v1304
  %v1329 = vpack.c.bf16 %v1305, %v1305
  %v1330 = vpack.c.bf16 %v1306, %v1306
  %v1331 = vunpack.c.l.bf16 %v1311
  %v1332 = vunpack.c.l.bf16 %v1312
  %v1333 = vunpack.c.l.bf16 %v1313
  %v1334 = vunpack.c.l.bf16 %v1314
  %v1335 = vunpack.c.h.bf16 %v1311
  %v1336 = vunpack.c.h.bf16 %v1312
  %v1337 = vunpack.c.h.bf16 %v1313
  %v1338 = vunpack.c.h.bf16 %v1314
  %v1339 = vunpack.c.l.bf16 %v1315
  %v1340 = vunpack.c.l.bf16 %v1316
  %v1341 = vunpack.c.l.bf16 %v1317
  %v1342 = vunpack.c.l.bf16 %v1318
  %v1343 = vunpack.c.h.bf16 %v1315
  %v1344 = vunpack.c.h.bf16 %v1316
  %v1345 = vunpack.c.h.bf16 %v1317
  %v1346 = vunpack.c.h.bf16 %v1318
  %v1347 = vunpack.c.l.bf16 %v1319
  %v1348 = vunpack.c.l.bf16 %v1320
  %v1349 = vunpack.c.l.bf16 %v1321
  %v1350 = vunpack.c.l.bf16 %v1322
  %v1351 = vunpack.c.h.bf16 %v1319
  %v1352 = vunpack.c.h.bf16 %v1320
  %v1353 = vunpack.c.h.bf16 %v1321
  %v1354 = vunpack.c.h.bf16 %v1322
  %v1355 = vunpack.c.l.bf16 %v1323
  %v1356 = vunpack.c.l.bf16 %v1324
  %v1357 = vunpack.c.l.bf16 %v1325
  %v1358 = vunpack.c.l.bf16 %v1326
  %v1359 = vunpack.c.h.bf16 %v1323
  %v1360 = vunpack.c.h.bf16 %v1324
  %v1361 = vunpack.c.h.bf16 %v1325
  %v1362 = vunpack.c.h.bf16 %v1326
  %v1363 = vunpack.c.l.bf16 %v1327
  %v1364 = vunpack.c.l.bf16 %v1328
  %v1365 = vunpack.c.l.bf16 %v1329
  %v1366 = vunpack.c.l.bf16 %v1330
  %v1367 = vsub.f32 %v1271, %v1331
  %v1368 = vsub.f32 %v1272, %v1332
  %v1369 = vsub.f32 %v1273, %v1333
  %v1370 = vsub.f32 %v1274, %v1334
  %v1371 = vsub.f32 %v1275, %v1335
  %v1372 = vsub.f32 %v1276, %v1336
  %v1373 = vsub.f32 %v1277, %v1337
  %v1374 = vsub.f32 %v1278, %v1338
  %v1375 = vsub.f32 %v1279, %v1339
  %v1376 = vsub.f32 %v1280, %v1340
  %v1377 = vsub.f32 %v1281, %v1341
  %v1378 = vsub.f32 %v1282, %v1342
  %v1379 = vsub.f32 %v1283, %v1343
  %v1380 = vsub.f32 %v1284, %v1344
  %v1381 = vsub.f32 %v1285, %v1345
  %v1382 = vsub.f32 %v1286, %v1346
  %v1383 = vsub.f32 %v1287, %v1347
  %v1384 = vsub.f32 %v1288, %v1348
  %v1385 = vsub.f32 %v1289, %v1349
  %v1386 = vsub.f32 %v1290, %v1350
  %v1387 = vsub.f32 %v1291, %v1351
  %v1388 = vsub.f32 %v1292, %v1352
  %v1389 = vsub.f32 %v1293, %v1353
  %v1390 = vsub.f32 %v1294, %v1354
  %v1391 = vsub.f32 %v1295, %v1355
  %v1392 = vsub.f32 %v1296, %v1356
  %v1393 = vsub.f32 %v1297, %v1357
  %v1394 = vsub.f32 %v1298, %v1358
  %v1395 = vsub.f32 %v1299, %v1359
  %v1396 = vsub.f32 %v1300, %v1360
  %v1397 = vsub.f32 %v1301, %v1361
  %v1398 = vsub.f32 %v1302, %v1362
  %v1399 = vsub.f32 %v1303, %v1363
  %v1400 = vsub.f32 %v1304, %v1364
  %v1401 = vsub.f32 %v1305, %v1365
  %v1402 = vsub.f32 %v1306, %v1366
  %v1403 = vpack.c.bf16 %v1371, %v1367
  %v1404 = vpack.c.bf16 %v1372, %v1368
  %v1405 = vpack.c.bf16 %v1373, %v1369
  %v1406 = vpack.c.bf16 %v1374, %v1370
  %v1407 = vpack.c.bf16 %v1379, %v1375
  %v1408 = vpack.c.bf16 %v1380, %v1376
  %v1409 = vpack.c.bf16 %v1381, %v1377
  %v1410 = vpack.c.bf16 %v1382, %v1378
  %v1411 = vpack.c.bf16 %v1387, %v1383
  %v1412 = vpack.c.bf16 %v1388, %v1384
  %v1413 = vpack.c.bf16 %v1389, %v1385
  %v1414 = vpack.c.bf16 %v1390, %v1386
  %v1415 = vpack.c.bf16 %v1395, %v1391
  %v1416 = vpack.c.bf16 %v1396, %v1392
  %v1417 = vpack.c.bf16 %v1397, %v1393
  %v1418 = vpack.c.bf16 %v1398, %v1394
  %v1419 = vpack.c.bf16 %v1399, %v1399
  %v1420 = vpack.c.bf16 %v1400, %v1400
  %v1421 = vpack.c.bf16 %v1401, %v1401
  %v1422 = vpack.c.bf16 %v1402, %v1402
  %v1424 = vsel %vm608, %v1310, 0
  %v1427 = vsel %vm612, %v1327, 0
  %v1430 = vsel %vm612, %v1328, 0
  %v1433 = vsel %vm612, %v1329, 0
  %v1436 = vsel %vm612, %v1330, 0
  %1438 = vmatprep.subr.bf16.mxu0 %v1312
  %1439 = vmatpush1.bf16.msra.mxu0 %v1311
  %1440 = vmatprep.subr.bf16.mxu0 %v1316
  %1441 = vmatpush1.bf16.msra.mxu0 %v1315
  %1442 = vmatprep.subr.bf16.mxu0 %v1320
  %1443 = vmatpush1.bf16.msra.mxu0 %v1319
  %1444 = vmatprep.subr.bf16.mxu0 %v1324
  %1445 = vmatpush1.bf16.msra.mxu0 %v1323
  %1446 = vmatprep.subr.bf16.mxu0 %v1430
  %1447 = vmatpush1.bf16.msra.mxu0 %v1427
  %1448 = vmatprep.subr.bf16.mxu0 0
  %1449 = vmatpush1.bf16.msra.mxu0 0
  %1450 = vmatprep.subr.bf16.mxu0 0
  %1451 = vmatpush1.bf16.msra.mxu0 0
  %1452 = vmatprep.subr.bf16.mxu0 0
  %1453 = vmatpush1.bf16.msra.mxu0 0
  %1454 = vmatprep.subr.bf16.mxu0 0
  %1455 = vmatpush1.bf16.msra.mxu0 0
  %1456 = vmatprep.subr.bf16.mxu0 0
  %1457 = vmatpush1.bf16.msra.mxu0 0
  %1458 = vmatprep.subr.bf16.mxu0 0
  %1459 = vmatpush1.bf16.msra.mxu0 0
  %1460 = vmatprep.subr.bf16.mxu0 0
  %1461 = vmatpush1.bf16.msra.mxu0 0
  %1462 = vmatprep.subr.bf16.mxu0 0
  %1463 = vmatpush1.bf16.msra.mxu0 0
  %1464 = vmatprep.subr.bf16.mxu0 0
  %1465 = vmatpush1.bf16.msra.mxu0 0
  %1466 = vmatprep.subr.bf16.mxu0 0
  %1467 = vmatpush1.bf16.msra.mxu0 0
  %1468 = vmatprep.subr.bf16.mxu0 0
  %1469 = vmatpush1.bf16.msra.mxu0 0
  %1470 = vmatprep.mubr.bf16.mxu0 0
  %1471 = vmatmul.mubr.bf16.gmra.mrb[0].mxu0 %v1424
  %v1472 = vpop.f32.mrb[0].mxu0
  %v1473 = vadd.f32 0.0, %v1472
  %v1474 = vpop.f32.mrb[0].mxu0
  %v1475 = vadd.f32 0.0, %v1474
  %v1476 = vpop.f32.mrb[0].mxu0
  %v1477 = vpop.f32.mrb[0].mxu0
  %1478 = vdwg.mxu0
  %1479 = vmatprep.subr.bf16.mxu0 %v1314
  %1480 = vmatpush1.bf16.msra.mxu0 %v1313
  %1481 = vmatprep.subr.bf16.mxu0 %v1318
  %1482 = vmatpush1.bf16.msra.mxu0 %v1317
  %1483 = vmatprep.subr.bf16.mxu0 %v1322
  %1484 = vmatpush1.bf16.msra.mxu0 %v1321
  %1485 = vmatprep.subr.bf16.mxu0 %v1326
  %1486 = vmatpush1.bf16.msra.mxu0 %v1325
  %1487 = vmatprep.subr.bf16.mxu0 %v1436
  %1488 = vmatpush1.bf16.msra.mxu0 %v1433
  %1489 = vmatprep.subr.bf16.mxu0 0
  %1490 = vmatpush1.bf16.msra.mxu0 0
  %1491 = vmatprep.subr.bf16.mxu0 0
  %1492 = vmatpush1.bf16.msra.mxu0 0
  %1493 = vmatprep.subr.bf16.mxu0 0
  %1494 = vmatpush1.bf16.msra.mxu0 0
  %1495 = vmatprep.subr.bf16.mxu0 0
  %1496 = vmatpush1.bf16.msra.mxu0 0
  %1497 = vmatprep.subr.bf16.mxu0 0
  %1498 = vmatpush1.bf16.msra.mxu0 0
  %1499 = vmatprep.subr.bf16.mxu0 0
  %1500 = vmatpush1.bf16.msra.mxu0 0
  %1501 = vmatprep.subr.bf16.mxu0 0
  %1502 = vmatpush1.bf16.msra.mxu0 0
  %1503 = vmatprep.subr.bf16.mxu0 0
  %1504 = vmatpush1.bf16.msra.mxu0 0
  %1505 = vmatprep.subr.bf16.mxu0 0
  %1506 = vmatpush1.bf16.msra.mxu0 0
  %1507 = vmatprep.subr.bf16.mxu0 0
  %1508 = vmatpush1.bf16.msra.mxu0 0
  %1509 = vmatprep.subr.bf16.mxu0 0
  %1510 = vmatpush1.bf16.msra.mxu0 0
  %1511 = vmatprep.mubr.bf16.mxu0 0
  %1512 = vmatmul.mubr.bf16.gmra.mrb[0].mxu0 %v1424
  %v1513 = vpop.f32.mrb[0].mxu0
  %v1514 = vadd.f32 0.0, %v1513
  %v1515 = vpop.f32.mrb[0].mxu0
  %v1516 = vadd.f32 0.0, %v1515
  %v1517 = vpop.f32.mrb[0].mxu0
  %v1518 = vpop.f32.mrb[0].mxu0
  %1519 = vdwg.mxu0
  %v1521 = vsel %vm608, %v1307, 0
  %1523 = vmatprep.subr.bf16.mxu0 %v1312
  %1524 = vmatpush1.bf16.msra.mxu0 %v1311
  %1525 = vmatprep.subr.bf16.mxu0 %v1316
  %1526 = vmatpush1.bf16.msra.mxu0 %v1315
  %1527 = vmatprep.subr.bf16.mxu0 %v1320
  %1528 = vmatpush1.bf16.msra.mxu0 %v1319
  %1529 = vmatprep.subr.bf16.mxu0 %v1324
  %1530 = vmatpush1.bf16.msra.mxu0 %v1323
  %1531 = vmatprep.subr.bf16.mxu0 %v1430
  %1532 = vmatpush1.bf16.msra.mxu0 %v1427
  %1533 = vmatprep.subr.bf16.mxu0 0
  %1534 = vmatpush1.bf16.msra.mxu0 0
  %1535 = vmatprep.subr.bf16.mxu0 0
  %1536 = vmatpush1.bf16.msra.mxu0 0
  %1537 = vmatprep.subr.bf16.mxu0 0
  %1538 = vmatpush1.bf16.msra.mxu0 0
  %1539 = vmatprep.subr.bf16.mxu0 0
  %1540 = vmatpush1.bf16.msra.mxu0 0
  %1541 = vmatprep.subr.bf16.mxu0 0
  %1542 = vmatpush1.bf16.msra.mxu0 0
  %1543 = vmatprep.subr.bf16.mxu0 0
  %1544 = vmatpush1.bf16.msra.mxu0 0
  %1545 = vmatprep.subr.bf16.mxu0 0
  %1546 = vmatpush1.bf16.msra.mxu0 0
  %1547 = vmatprep.subr.bf16.mxu0 0
  %1548 = vmatpush1.bf16.msra.mxu0 0
  %1549 = vmatprep.subr.bf16.mxu0 0
  %1550 = vmatpush1.bf16.msra.mxu0 0
  %1551 = vmatprep.subr.bf16.mxu0 0
  %1552 = vmatpush1.bf16.msra.mxu0 0
  %1553 = vmatprep.subr.bf16.mxu0 0
  %1554 = vmatpush1.bf16.msra.mxu0 0
  %1555 = vmatprep.mubr.bf16.mxu0 0
  %1556 = vmatmul.mubr.bf16.gmra.mrb[0].mxu0 %v1521
  %v1557 = vpop.f32.mrb[0].mxu0
  %v1558 = vadd.f32 %v1473, %v1557
  %v1559 = vpop.f32.mrb[0].mxu0
  %v1560 = vadd.f32 %v1475, %v1559
  %v1561 = vpop.f32.mrb[0].mxu0
  %v1562 = vpop.f32.mrb[0].mxu0
  %1563 = vdwg.mxu0
  %1564 = vmatprep.subr.bf16.mxu0 %v1314
  %1565 = vmatpush1.bf16.msra.mxu0 %v1313
  %1566 = vmatprep.subr.bf16.mxu0 %v1318
  %1567 = vmatpush1.bf16.msra.mxu0 %v1317
  %1568 = vmatprep.subr.bf16.mxu0 %v1322
  %1569 = vmatpush1.bf16.msra.mxu0 %v1321
  %1570 = vmatprep.subr.bf16.mxu0 %v1326
  %1571 = vmatpush1.bf16.msra.mxu0 %v1325
  %1572 = vmatprep.subr.bf16.mxu0 %v1436
  %1573 = vmatpush1.bf16.msra.mxu0 %v1433
  %1574 = vmatprep.subr.bf16.mxu0 0
  %1575 = vmatpush1.bf16.msra.mxu0 0
  %1576 = vmatprep.subr.bf16.mxu0 0
  %1577 = vmatpush1.bf16.msra.mxu0 0
  %1578 = vmatprep.subr.bf16.mxu0 0
  %1579 = vmatpush1.bf16.msra.mxu0 0
  %1580 = vmatprep.subr.bf16.mxu0 0
  %1581 = vmatpush1.bf16.msra.mxu0 0
  %1582 = vmatprep.subr.bf16.mxu0 0
  %1583 = vmatpush1.bf16.msra.mxu0 0
  %1584 = vmatprep.subr.bf16.mxu0 0
  %1585 = vmatpush1.bf16.msra.mxu0 0
  %1586 = vmatprep.subr.bf16.mxu0 0
  %1587 = vmatpush1.bf16.msra.mxu0 0
  %1588 = vmatprep.subr.bf16.mxu0 0
  %1589 = vmatpush1.bf16.msra.mxu0 0
  %1590 = vmatprep.subr.bf16.mxu0 0
  %1591 = vmatpush1.bf16.msra.mxu0 0
  %1592 = vmatprep.subr.bf16.mxu0 0
  %1593 = vmatpush1.bf16.msra.mxu0 0
  %1594 = vmatprep.subr.bf16.mxu0 0
  %1595 = vmatpush1.bf16.msra.mxu0 0
  %1596 = vmatprep.mubr.bf16.mxu0 0
  %1597 = vmatmul.mubr.bf16.gmra.mrb[0].mxu0 %v1521
  %v1598 = vpop.f32.mrb[0].mxu0
  %v1599 = vadd.f32 %v1514, %v1598
  %v1600 = vpop.f32.mrb[0].mxu0
  %v1601 = vadd.f32 %v1516, %v1600
  %v1602 = vpop.f32.mrb[0].mxu0
  %v1603 = vpop.f32.mrb[0].mxu0
  %1604 = vdwg.mxu0
  %v1606 = vsel %vm612, %v1419, 0
  %v1609 = vsel %vm612, %v1420, 0
  %v1612 = vsel %vm612, %v1421, 0
  %v1615 = vsel %vm612, %v1422, 0
  %1617 = vmatprep.subr.bf16.mxu0 %v1404
  %1618 = vmatpush1.bf16.msra.mxu0 %v1403
  %1619 = vmatprep.subr.bf16.mxu0 %v1408
  %1620 = vmatpush1.bf16.msra.mxu0 %v1407
  %1621 = vmatprep.subr.bf16.mxu0 %v1412
  %1622 = vmatpush1.bf16.msra.mxu0 %v1411
  %1623 = vmatprep.subr.bf16.mxu0 %v1416
  %1624 = vmatpush1.bf16.msra.mxu0 %v1415
  %1625 = vmatprep.subr.bf16.mxu0 %v1609
  %1626 = vmatpush1.bf16.msra.mxu0 %v1606
  %1627 = vmatprep.subr.bf16.mxu0 0
  %1628 = vmatpush1.bf16.msra.mxu0 0
  %1629 = vmatprep.subr.bf16.mxu0 0
  %1630 = vmatpush1.bf16.msra.mxu0 0
  %1631 = vmatprep.subr.bf16.mxu0 0
  %1632 = vmatpush1.bf16.msra.mxu0 0
  %1633 = vmatprep.subr.bf16.mxu0 0
  %1634 = vmatpush1.bf16.msra.mxu0 0
  %1635 = vmatprep.subr.bf16.mxu0 0
  %1636 = vmatpush1.bf16.msra.mxu0 0
  %1637 = vmatprep.subr.bf16.mxu0 0
  %1638 = vmatpush1.bf16.msra.mxu0 0
  %1639 = vmatprep.subr.bf16.mxu0 0
  %1640 = vmatpush1.bf16.msra.mxu0 0
  %1641 = vmatprep.subr.bf16.mxu0 0
  %1642 = vmatpush1.bf16.msra.mxu0 0
  %1643 = vmatprep.subr.bf16.mxu0 0
  %1644 = vmatpush1.bf16.msra.mxu0 0
  %1645 = vmatprep.subr.bf16.mxu0 0
  %1646 = vmatpush1.bf16.msra.mxu0 0
  %1647 = vmatprep.subr.bf16.mxu0 0
  %1648 = vmatpush1.bf16.msra.mxu0 0
  %1649 = vmatprep.mubr.bf16.mxu0 0
  %1650 = vmatmul.mubr.bf16.gmra.mrb[0].mxu0 %v1521
  %v1651 = vpop.f32.mrb[0].mxu0
  %v1652 = vadd.f32 0.0, %v1651
  %v1653 = vpop.f32.mrb[0].mxu0
  %v1654 = vadd.f32 0.0, %v1653
  %v1655 = vpop.f32.mrb[0].mxu0
  %v1656 = vpop.f32.mrb[0].mxu0
  %1657 = vdwg.mxu0
  %1658 = vmatprep.subr.bf16.mxu0 %v1406
  %1659 = vmatpush1.bf16.msra.mxu0 %v1405
  %1660 = vmatprep.subr.bf16.mxu0 %v1410
  %1661 = vmatpush1.bf16.msra.mxu0 %v1409
  %1662 = vmatprep.subr.bf16.mxu0 %v1414
  %1663 = vmatpush1.bf16.msra.mxu0 %v1413
  %1664 = vmatprep.subr.bf16.mxu0 %v1418
  %1665 = vmatpush1.bf16.msra.mxu0 %v1417
  %1666 = vmatprep.subr.bf16.mxu0 %v1615
  %1667 = vmatpush1.bf16.msra.mxu0 %v1612
  %1668 = vmatprep.subr.bf16.mxu0 0
  %1669 = vmatpush1.bf16.msra.mxu0 0
  %1670 = vmatprep.subr.bf16.mxu0 0
  %1671 = vmatpush1.bf16.msra.mxu0 0
  %1672 = vmatprep.subr.bf16.mxu0 0
  %1673 = vmatpush1.bf16.msra.mxu0 0
  %1674 = vmatprep.subr.bf16.mxu0 0
  %1675 = vmatpush1.bf16.msra.mxu0 0
  %1676 = vmatprep.subr.bf16.mxu0 0
  %1677 = vmatpush1.bf16.msra.mxu0 0
  %1678 = vmatprep.subr.bf16.mxu0 0
  %1679 = vmatpush1.bf16.msra.mxu0 0
  %1680 = vmatprep.subr.bf16.mxu0 0
  %1681 = vmatpush1.bf16.msra.mxu0 0
  %1682 = vmatprep.subr.bf16.mxu0 0
  %1683 = vmatpush1.bf16.msra.mxu0 0
  %1684 = vmatprep.subr.bf16.mxu0 0
  %1685 = vmatpush1.bf16.msra.mxu0 0
  %1686 = vmatprep.subr.bf16.mxu0 0
  %1687 = vmatpush1.bf16.msra.mxu0 0
  %1688 = vmatprep.subr.bf16.mxu0 0
  %1689 = vmatpush1.bf16.msra.mxu0 0
  %1690 = vmatprep.mubr.bf16.mxu0 0
  %1691 = vmatmul.mubr.bf16.gmra.mrb[0].mxu0 %v1521
  %v1692 = vpop.f32.mrb[0].mxu0
  %v1693 = vadd.f32 0.0, %v1692
  %v1694 = vpop.f32.mrb[0].mxu0
  %v1695 = vadd.f32 0.0, %v1694
  %v1696 = vpop.f32.mrb[0].mxu0
  %v1697 = vpop.f32.mrb[0].mxu0
  %1698 = vdwg.mxu0
  %v1699 = vadd.f32 %v1558, %v1652
  %v1700 = vadd.f32 %v1560, %v1654
  %v1701 = vadd.f32 %v1599, %v1693
  %v1702 = vadd.f32 %v1601, %v1695
  %v1703 = vld [vmem:[%s4] sm:$0xff]
  %1705 = vset.pattern.permute.xlu0 0
  %1706 = vperm.xlu0 %1705, %v1703
  %v1707 = vpop.permute.xlu0 %1706
  %v1709 = vadd.f32 %v1699, %v1707
  %v1710 = vadd.f32 %v1700, %v1707
  %v1711 = vadd.f32 %v1701, %v1707
  %v1712 = vadd.f32 %v1702, %v1707
  %v1713 = vmax.f32 %v1709, 0.0
  %v1714 = vmax.f32 %v1710, 0.0
  %v1715 = vmax.f32 %v1711, 0.0
  %v1716 = vmax.f32 %v1712, 0.0
  %v1717 = vld [vmem:[%s5] sm:$0xff]
  %s1718 = scalar_lea.vmem %s5, 8
  %v1719 = vld [vmem:[%s1718] sm:$0xff]
  %v1721 = vcombine.high %v1717, %v1717
  %v1724 = vcombine.high %v1719, %v1719
  %v1726 = vadd.f32 %v1713, %v1717
  %v1727 = vadd.f32 %v1714, %v1721
  %v1728 = vadd.f32 %v1715, %v1719
  %v1729 = vadd.f32 %v1716, %v1724
  %v1730 = vmul.f32 %v1726, 3.3333333
  %v1731 = vmul.f32 %v1727, 3.3333333
  %v1732 = vmul.f32 %v1728, 3.3333333
  %v1733 = vmul.f32 %v1729, 3.3333333
  %v1734 = vsel %vm612, %v1730, -inf
  %v1735 = vrot.slane %v1734, 4
  %v1736 = vmax.f32 %v1734, %v1735
  %v1737 = vrot.slane %v1736, 2
  %v1738 = vmax.f32 %v1736, %v1737
  %v1739 = vrot.slane %v1738, 1
  %v1740 = vmax.f32 %v1738, %v1739
  %v1741 = vsel %vm612, %v1731, -inf
  %v1742 = vrot.slane %v1741, 4
  %v1743 = vmax.f32 %v1741, %v1742
  %v1744 = vrot.slane %v1743, 2
  %v1745 = vmax.f32 %v1743, %v1744
  %v1746 = vrot.slane %v1745, 1
  %v1747 = vmax.f32 %v1745, %v1746
  %v1748 = vsel %vm612, %v1732, -inf
  %v1749 = vrot.slane %v1748, 4
  %v1750 = vmax.f32 %v1748, %v1749
  %v1751 = vrot.slane %v1750, 2
  %v1752 = vmax.f32 %v1750, %v1751
  %v1753 = vrot.slane %v1752, 1
  %v1754 = vmax.f32 %v1752, %v1753
  %v1755 = vsel %vm612, %v1733, -inf
  %v1756 = vrot.slane %v1755, 4
  %v1757 = vmax.f32 %v1755, %v1756
  %v1758 = vrot.slane %v1757, 2
  %v1759 = vmax.f32 %v1757, %v1758
  %v1760 = vrot.slane %v1759, 1
  %v1761 = vmax.f32 %v1759, %v1760
  %v1762 = vsub.f32 %v1730, %v1740
  %v1763 = vsub.f32 %v1731, %v1747
  %v1764 = vsub.f32 %v1732, %v1754
  %v1765 = vsub.f32 %v1733, %v1761
  %v1766 = vmul.f32 %v1762, 1.442695
  %v1767 = vpow.pop %v1766
  %v1768 = vmul.f32 %v1763, 1.442695
  %v1769 = vpow.pop %v1768
  %v1770 = vmul.f32 %v1764, 1.442695
  %v1771 = vpow.pop %v1770
  %v1772 = vmul.f32 %v1765, 1.442695
  %v1773 = vpow.pop %v1772
  %v1774 = vsel %vm612, %v1767, 0.0
  %v1775 = vrot.slane %v1774, 4
  %v1776 = vadd.f32 %v1774, %v1775
  %v1777 = vrot.slane %v1776, 2
  %v1778 = vadd.f32 %v1776, %v1777
  %v1779 = vrot.slane %v1778, 1
  %v1780 = vadd.f32 %v1778, %v1779
  %v1781 = vsel %vm612, %v1769, 0.0
  %v1782 = vrot.slane %v1781, 4
  %v1783 = vadd.f32 %v1781, %v1782
  %v1784 = vrot.slane %v1783, 2
  %v1785 = vadd.f32 %v1783, %v1784
  %v1786 = vrot.slane %v1785, 1
  %v1787 = vadd.f32 %v1785, %v1786
  %v1788 = vsel %vm612, %v1771, 0.0
  %v1789 = vrot.slane %v1788, 4
  %v1790 = vadd.f32 %v1788, %v1789
  %v1791 = vrot.slane %v1790, 2
  %v1792 = vadd.f32 %v1790, %v1791
  %v1793 = vrot.slane %v1792, 1
  %v1794 = vadd.f32 %v1792, %v1793
  %v1795 = vsel %vm612, %v1773, 0.0
  %v1796 = vrot.slane %v1795, 4
  %v1797 = vadd.f32 %v1795, %v1796
  %v1798 = vrot.slane %v1797, 2
  %v1799 = vadd.f32 %v1797, %v1798
  %v1800 = vrot.slane %v1799, 1
  %v1801 = vadd.f32 %v1799, %v1800
  %v1802 = vrcp.pop %v1780
  %v1803 = vrcp.pop %v1787
  %v1804 = vrcp.pop %v1794
  %v1805 = vrcp.pop %v1801
  %v1806 = vmul.f32 %v1780, %v1802
  %v1807 = vmul.f32 %v1787, %v1803
  %v1808 = vmul.f32 %v1794, %v1804
  %v1809 = vmul.f32 %v1801, %v1805
  %v1810 = vsub.f32 2.0, %v1806
  %v1811 = vsub.f32 2.0, %v1807
  %v1812 = vsub.f32 2.0, %v1808
  %v1813 = vsub.f32 2.0, %v1809
  %v1814 = vmul.f32 %v1802, %v1810
  %v1815 = vmul.f32 %v1803, %v1811
  %v1816 = vmul.f32 %v1804, %v1812
  %v1817 = vmul.f32 %v1805, %v1813
  %v1818 = vmul.f32 %v1767, %v1814
  %v1819 = vmul.f32 %v1769, %v1815
  %v1820 = vmul.f32 %v1771, %v1816
  %v1821 = vmul.f32 %v1773, %v1817
  %v1822 = vadd.f32 %v1818, 1.0
  %v1823 = vadd.f32 %v1819, 1.0
  %v1824 = vlaneseq
  %v1825 = vshrl.u32 %v1824, 7
  %v1826 = vsub.s32 0, %v1825
  %v1827 = vrot.slane %v1822, %v1826
  %v1828 = vlaneseq
  %v1829 = vshrl.u32 %v1828, 7
  %v1830 = vsub.s32 0, %v1829
  %v1831 = vrot.slane %v1823, %v1830
  %v1832 = vmul.f32 %v27, %v1827
  %v1833 = vmul.f32 %v28, %v1831
  %1834 = vst [vmem:[%s7] sm:$0x3] %v1832
  %1835 = vst [vmem:[%s7 + $0x8] sm:$0x3] %v1833
  %v1836 = vadd.f32 %v1820, 1.0
  %v1837 = vadd.f32 %v1821, 1.0
  %v1838 = vlaneseq
  %v1839 = vshrl.u32 %v1838, 7
  %v1840 = vsub.s32 0, %v1839
  %v1841 = vrot.slane %v1836, %v1840
  %v1842 = vlaneseq
  %v1843 = vshrl.u32 %v1842, 7
  %v1844 = vsub.s32 0, %v1843
  %v1845 = vrot.slane %v1837, %v1844
  %v1846 = vmul.f32 %v27, %v1841
  %v1847 = vmul.f32 %v28, %v1845
  %1848 = vst [vmem:[%s7] sm:$0xc] %v1846
  %1849 = vst [vmem:[%s7 + $0x8] sm:$0xc] %v1847
  %v1850 = vlaneseq
  %v1851 = vshrl.u32 %v1850, 7
  %v1852 = vsub.s32 1, %v1851
  %v1853 = vrot.slane %v1822, %v1852
  %v1854 = vlaneseq
  %v1855 = vshrl.u32 %v1854, 7
  %v1856 = vsub.s32 1, %v1855
  %v1857 = vrot.slane %v1823, %v1856
  %v1858 = vmul.f32 %v27, %v1853
  %v1859 = vmul.f32 %v28, %v1857
  %1860 = vst [vmem:[%s7] sm:$0x30] %v1858
  %1861 = vst [vmem:[%s7 + $0x8] sm:$0x30] %v1859
  %v1862 = vlaneseq
  %v1863 = vshrl.u32 %v1862, 7
  %v1864 = vsub.s32 1, %v1863
  %v1865 = vrot.slane %v1836, %v1864
  %v1866 = vlaneseq
  %v1867 = vshrl.u32 %v1866, 7
  %v1868 = vsub.s32 1, %v1867
  %v1869 = vrot.slane %v1837, %v1868
  %v1870 = vmul.f32 %v27, %v1865
  %v1871 = vmul.f32 %v28, %v1869
  %1872 = vst [vmem:[%s7] sm:$0xc0] %v1870
  %1873 = vst [vmem:[%s7 + $0x8] sm:$0xc0] %v1871
  // Predicated region
  $region30: #{longshort_gate.1} parent=0 // pred_check
    _
  $region31: #{longshort_gate.1} parent=0 // pred_check_branch
    %1875 = sbr.rel (0) target = $region33
  $region32: #{longshort_gate.1} parent=0 // pred_region
    _
  $region33: #{longshort_gate.1} parent=0 // pred_fallthru
    _
  // Predicated region
  $region34: #{longshort_gate.1} parent=0 // pred_check
    _
  $region35: #{longshort_gate.1} parent=0 // pred_check_branch
    %1877 = sbr.rel (0) target = $region37
  $region36: #{longshort_gate.1} parent=0 // pred_region
    _
  $region37: #{longshort_gate.1} parent=0 // pred_fallthru
    _

</llo_original>
